<compile_context>
chip_gen: v7x
topology: tpu7x:2x2x1
jax: 0.10.0
libtpu: 0.0.40
codegen_flags: <defaults>
</compile_context>

<pallas_src>
import jax
import jax.numpy as jnp
from jax import lax
from jax.experimental import pallas as pl
from jax.experimental.pallas import tpu as pltpu

# ---------------- model hyper-params (small, synthetic) ----------------
B = 2            # batch
C_IN = 4         # input channels
H = W = 16       # spatial
DIM = 128        # featurizer dim_out (stand-in for 2048 of resnet50)
N_CLASSES = 2
N_DOMAINS = 3    # domain branch exists in __init__ but is unused by forward()
TEMP = 0.05
BN_EPS = 1e-5
NORM_EPS = 1e-12

K_TAP = 16                   # per-di tap width: 3*C_IN = 12 padded to 16 (sublane aligned)
HW = H * W                   # rows per image in the conv activation (256)
ROWS = B * HW                # total conv activation rows (512)
HP_ROWS = (H + 2) * W        # rows per image in the i-padded tap tensor (288)
OUT_ROWS, OUT_COLS = 8, 128  # sublane/lane-dense padded logits block

# row indices inside the packed (16, DIM) small-parameter slab
V_CONV_G, V_CONV_B = 0, 1
V_B1, V_G1, V_BE1 = 2, 3, 4
V_B2, V_G2, V_BE2 = 5, 6, 7
V_B3 = 8
V_ROWS = 16

# row offsets inside the merged (560, DIM) bf16 weight slab (all multiples of 16)
W_CONV_ROW = 0
W1_ROW = 3 * K_TAP           # 48
W2_ROW = W1_ROW + DIM        # 176
W3_ROW = W2_ROW + DIM        # 304
WC_ROW = W3_ROW + DIM        # 432
W_ALL_ROWS = WC_ROW + DIM    # 560


def _fused_kernel(x_ref, vec_ref, w_ref, o_ref):
    # ---- featurizer stem: 3x3 conv as 6 accumulating K=16 matmuls (bf16 -> f32 acc) ----
    # x_ref rows: b*HP_ROWS + (i+di)*W + j  (i-padded, dj/c already unfolded into lanes)
    def conv_half(row0):
        acc = jnp.zeros((HW, DIM), jnp.float32)
        for di in range(3):                              # static unroll, sublane-aligned slices
            acc = acc + jnp.dot(
                x_ref[row0 + di * W: row0 + di * W + HW, :],
                w_ref[W_CONV_ROW + di * K_TAP: W_CONV_ROW + (di + 1) * K_TAP, :],
                preferred_element_type=jnp.float32)
        return acc

    h0 = conv_half(0)            # (HW, DIM) f32, image 0
    h1 = conv_half(HP_ROWS)      # (HW, DIM) f32, image 1

    # BN2d training statistics over all N*H*W rows (single s1/s2 pass, folded gamma/beta)
    inv_n = 1.0 / float(ROWS)
    s1 = jnp.sum(h0, axis=0, keepdims=True) + jnp.sum(h1, axis=0, keepdims=True)
    s2 = jnp.sum(h0 * h0, axis=0, keepdims=True) + jnp.sum(h1 * h1, axis=0, keepdims=True)
    mu = s1 * inv_n
    var = jnp.maximum(s2 * inv_n - mu * mu, 0.0)         # guard vs. cancellation
    scale = lax.rsqrt(var + BN_EPS) * vec_ref[V_CONV_G:V_CONV_G + 1, :]
    shift = vec_ref[V_CONV_B:V_CONV_B + 1, :] - mu * scale

    # fused BN-apply + ReLU + global average pool (activation never re-materialized)
    inv_hw = 1.0 / float(HW)
    f0 = jnp.sum(jnp.maximum(h0 * scale + shift, 0.0), axis=0, keepdims=True) * inv_hw
    f1 = jnp.sum(jnp.maximum(h1 * scale + shift, 0.0), axis=0, keepdims=True) * inv_hw
    feat = jnp.concatenate(
        [f0, f1, jnp.zeros((OUT_ROWS - B, DIM), jnp.float32)], axis=0)   # (8, DIM)

    # ---- encoder_label: MLP = 2 x (Linear + BN1d + ReLU) + Linear, 8-row padded batch ----
    def linear(x8, w_row, b_row):
        return jnp.dot(x8.astype(jnp.bfloat16), w_ref[w_row:w_row + DIM, :],
                       preferred_element_type=jnp.float32) + vec_ref[b_row:b_row + 1, :]

    def bn_relu(z8, g_row, be_row):
        zb = z8[0:B, :]                                  # stats from the real rows only
        m = jnp.sum(zb, axis=0, keepdims=True) * (1.0 / B)
        v = jnp.maximum(jnp.sum(zb * zb, axis=0, keepdims=True) * (1.0 / B) - m * m, 0.0)
        sc = lax.rsqrt(v + BN_EPS) * vec_ref[g_row:g_row + 1, :]
        sh = vec_ref[be_row:be_row + 1, :] - m * sc
        return jnp.maximum(z8 * sc + sh, 0.0)

    z = bn_relu(linear(feat, W1_ROW, V_B1), V_G1, V_BE1)
    z = bn_relu(linear(z, W2_ROW, V_B2), V_G2, V_BE2)
    emb = linear(z, W3_ROW, V_B3)                        # (8, DIM) f32

    # ---- classifier_label: cosine classifier, 1/temp folded into the row scale ----
    # classifier weight stored pre-transposed + zero-padded (DIM, 128): zero columns
    # normalize to 0 (no NaN) and are sliced off in the wrapper.
    x_n = emb * (lax.rsqrt(jnp.sum(emb * emb, axis=1, keepdims=True) + NORM_EPS)
                 * (1.0 / TEMP))
    wc = w_ref[WC_ROW:WC_ROW + DIM, :].astype(jnp.float32)
    w_n = wc * lax.rsqrt(jnp.sum(wc * wc, axis=0, keepdims=True) + NORM_EPS)
    logits = jnp.dot(x_n.astype(jnp.bfloat16), w_n.astype(jnp.bfloat16),
                     preferred_element_type=jnp.float32)                 # (8, 128)

    # one unmasked full-tile store (padded rows carry garbage, sliced off outside)
    o_ref[...] = logits


def _full_spec(shape):
    nd = len(shape)
    return pl.BlockSpec(shape, lambda i, _nd=nd: (0,) * _nd)


@jax.jit
def training_model_forward(x_nchw, params):
    """x_nchw: (B, C_IN, H, W) float32 -> logits (B, N_CLASSES) float32."""
    # ---- tiny host-side prep (reshapes/pads of the 8 KB input only; conv runs in-kernel) ----
    x = jnp.transpose(x_nchw, (0, 2, 3, 1))                             # NHWC (B,H,W,C)
    xj = jnp.pad(x, ((0, 0), (0, 0), (1, 1), (0, 0)))                   # pad j by 1 each side
    taps = jnp.concatenate([xj[:, :, d:d + W, :] for d in range(3)],
                           axis=-1)                                     # (B,H,W,3*C) dj unfold
    taps = jnp.pad(taps, ((0, 0), (1, 1), (0, 0), (0, 0)))              # pad i -> (B,H+2,W,3*C)
    x3p = taps.reshape(B * (H + 2) * W, 3 * C_IN)                       # (576, 12)
    x3p = jnp.pad(x3p, ((0, 0), (0, K_TAP - 3 * C_IN))).astype(jnp.bfloat16)   # (576, 16) bf16

    args = (x3p,                 # (576, 16)  bf16  i-padded / dj-unfolded input taps
            params['vecs'],      # (16, 128)  f32   packed small params
            params['w_all'])     # (560, 128) bf16  conv taps + w1/w2/w3 + classifier weight

    ce = pl.CostEstimate(
        flops=2 * ROWS * K_TAP * DIM * 3 + 4 * 2 * OUT_ROWS * DIM * DIM,
        transcendentals=6 * DIM,
        bytes_accessed=(x3p.size * 2 + params['vecs'].size * 4
                        + params['w_all'].size * 2 + OUT_ROWS * OUT_COLS * 4))

    logits_pad = pl.pallas_call(
        _fused_kernel,
        out_shape=jax.ShapeDtypeStruct((OUT_ROWS, OUT_COLS), jnp.float32),
        grid=(1,),
        in_specs=[_full_spec(a.shape) for a in args],
        out_specs=_full_spec((OUT_ROWS, OUT_COLS)),
        compiler_params=pltpu.CompilerParams(
            dimension_semantics=("arbitrary",)),
        cost_estimate=ce,
    )(*args)

    return logits_pad[:B, :N_CLASSES]


def init_params(key):
    ks = jax.random.split(key, 16)

    def nrm(k, shape, scale=0.05):
        return (scale * jax.random.normal(k, shape)).astype(jnp.float32)

    # featurizer stem conv weight: per di a (K_TAP, DIM) block with rows dj*C_IN+c (12 used)
    w_conv = nrm(ks[0], (3, 3 * C_IN, DIM))
    w_conv = jnp.pad(w_conv, ((0, 0), (0, K_TAP - 3 * C_IN), (0, 0))).reshape(3 * K_TAP, DIM)

    # all small (1,DIM) parameters packed into one (16, DIM) slab
    vecs = jnp.zeros((V_ROWS, DIM), jnp.float32)
    vecs = vecs.at[V_CONV_G].set(1.0 + nrm(ks[1], (DIM,), 0.01))
    vecs = vecs.at[V_CONV_B].set(nrm(ks[2], (DIM,), 0.01))
    vecs = vecs.at[V_B1].set(nrm(ks[4], (DIM,), 0.01))
    vecs = vecs.at[V_G1].set(1.0 + nrm(ks[5], (DIM,), 0.01))
    vecs = vecs.at[V_BE1].set(nrm(ks[6], (DIM,), 0.01))
    vecs = vecs.at[V_B2].set(nrm(ks[8], (DIM,), 0.01))
    vecs = vecs.at[V_G2].set(1.0 + nrm(ks[9], (DIM,), 0.01))
    vecs = vecs.at[V_BE2].set(nrm(ks[10], (DIM,), 0.01))
    vecs = vecs.at[V_B3].set(nrm(ks[12], (DIM,), 0.01))

    # encoder_label MLP weights (stored (in,out) => y = x @ W + b)
    w1 = nrm(ks[3], (DIM, DIM))
    w2 = nrm(ks[7], (DIM, DIM))
    w3 = nrm(ks[11], (DIM, DIM))

    # cosine-classifier weight, stored transposed + zero-padded to (DIM, OUT_COLS)
    wc = nrm(ks[13], (N_CLASSES, DIM))
    wc_t = jnp.zeros((DIM, OUT_COLS), jnp.float32).at[:, :N_CLASSES].set(wc.T)

    # single merged bf16 weight slab: conv taps + w1 + w2 + w3 + classifier
    w_all = jnp.concatenate([w_conv, w1, w2, w3, wc_t], axis=0).astype(jnp.bfloat16)
    assert w_all.shape == (W_ALL_ROWS, DIM)

    # (encoder_domain / classifier_domain / projectors exist in __init__ but are
    #  not used by forward(), so they are omitted here.)
    return {'vecs': vecs, 'w_all': w_all}


if __name__ == "__main__":
    key = jax.random.PRNGKey(0)
    kx, kp = jax.random.split(key)
    x = jax.random.normal(kx, (B, C_IN, H, W), dtype=jnp.float32)
    params = init_params(kp)

    logits = training_model_forward(x, params)
    jax.block_until_ready(logits)
    assert logits.shape == (B, N_CLASSES) and logits.dtype == jnp.float32
    print("KERNEL_OK")
</pallas_src>

<mosaic_0001>
module attributes {stable_mosaic.version = 11 : i64} {
  func.func @_fused_kernel(%arg0: i32, %arg1: memref<576x16xbf16, #tpu.memory_space<vmem>>, %arg2: memref<16x128xf32, #tpu.memory_space<vmem>>, %arg3: memref<560x128xbf16, #tpu.memory_space<vmem>>, %arg4: memref<8x128xf32, #tpu.memory_space<vmem>>) attributes {dimension_semantics = [#tpu.dimension_semantics<arbitrary>], iteration_bounds = array<i64: 1>, scalar_prefetch = 0 : i64, scratch_operands = 0 : i64, tpu.core_type = #tpu.core_type<tc>, window_params = [{pipeline_mode = #tpu.pipeline_mode<synchronous>, transform_indices = @transform_0, window_bounds = array<i64: 576, 16>}, {pipeline_mode = #tpu.pipeline_mode<synchronous>, transform_indices = @transform_1, window_bounds = array<i64: 16, 128>}, {pipeline_mode = #tpu.pipeline_mode<synchronous>, transform_indices = @transform_2, window_bounds = array<i64: 560, 128>}, {pipeline_mode = #tpu.pipeline_mode<synchronous>, transform_indices = @transform_3, window_bounds = array<i64: 8, 128>}]} {
    %cst = arith.constant 0.000000e+00 : f32
    %0 = vector.broadcast %cst : f32 to vector<256x128xf32>
    %c0 = arith.constant 0 : index
    %c0_0 = arith.constant 0 : index
    %1 = vector.load %arg1[%c0, %c0_0] : memref<576x16xbf16, #tpu.memory_space<vmem>>, vector<256x16xbf16>
    %c0_1 = arith.constant 0 : index
    %c0_2 = arith.constant 0 : index
    %2 = vector.load %arg3[%c0_1, %c0_2] : memref<560x128xbf16, #tpu.memory_space<vmem>>, vector<16x128xbf16>
    %cst_3 = arith.constant dense<0.000000e+00> : vector<256x128xf32>
    %3 = tpu.matmul %1, %2, %cst_3 {dimension_numbers = #tpu.dot_dimension_numbers<[1], [0], [0], [1], [0, 0, 1, 1], [], []>} : vector<256x16xbf16>, vector<16x128xbf16>, vector<256x128xf32> -> vector<256x128xf32>
    %4 = arith.addf %0, %3 : vector<256x128xf32>
    %c16 = arith.constant 16 : index
    %c0_4 = arith.constant 0 : index
    %5 = vector.load %arg1[%c16, %c0_4] : memref<576x16xbf16, #tpu.memory_space<vmem>>, vector<256x16xbf16>
    %c16_5 = arith.constant 16 : index
    %c0_6 = arith.constant 0 : index
    %6 = vector.load %arg3[%c16_5, %c0_6] : memref<560x128xbf16, #tpu.memory_space<vmem>>, vector<16x128xbf16>
    %cst_7 = arith.constant dense<0.000000e+00> : vector<256x128xf32>
    %7 = tpu.matmul %5, %6, %cst_7 {dimension_numbers = #tpu.dot_dimension_numbers<[1], [0], [0], [1], [0, 0, 1, 1], [], []>} : vector<256x16xbf16>, vector<16x128xbf16>, vector<256x128xf32> -> vector<256x128xf32>
    %8 = arith.addf %4, %7 : vector<256x128xf32>
    %c32 = arith.constant 32 : index
    %c0_8 = arith.constant 0 : index
    %9 = vector.load %arg1[%c32, %c0_8] : memref<576x16xbf16, #tpu.memory_space<vmem>>, vector<256x16xbf16>
    %c32_9 = arith.constant 32 : index
    %c0_10 = arith.constant 0 : index
    %10 = vector.load %arg3[%c32_9, %c0_10] : memref<560x128xbf16, #tpu.memory_space<vmem>>, vector<16x128xbf16>
    %cst_11 = arith.constant dense<0.000000e+00> : vector<256x128xf32>
    %11 = tpu.matmul %9, %10, %cst_11 {dimension_numbers = #tpu.dot_dimension_numbers<[1], [0], [0], [1], [0, 0, 1, 1], [], []>} : vector<256x16xbf16>, vector<16x128xbf16>, vector<256x128xf32> -> vector<256x128xf32>
    %12 = arith.addf %8, %11 : vector<256x128xf32>
    %cst_12 = arith.constant 0.000000e+00 : f32
    %13 = vector.broadcast %cst_12 : f32 to vector<256x128xf32>
    %c288 = arith.constant 288 : index
    %c0_13 = arith.constant 0 : index
    %14 = vector.load %arg1[%c288, %c0_13] : memref<576x16xbf16, #tpu.memory_space<vmem>>, vector<256x16xbf16>
    %c0_14 = arith.constant 0 : index
    %c0_15 = arith.constant 0 : index
    %15 = vector.load %arg3[%c0_14, %c0_15] : memref<560x128xbf16, #tpu.memory_space<vmem>>, vector<16x128xbf16>
    %cst_16 = arith.constant dense<0.000000e+00> : vector<256x128xf32>
    %16 = tpu.matmul %14, %15, %cst_16 {dimension_numbers = #tpu.dot_dimension_numbers<[1], [0], [0], [1], [0, 0, 1, 1], [], []>} : vector<256x16xbf16>, vector<16x128xbf16>, vector<256x128xf32> -> vector<256x128xf32>
    %17 = arith.addf %13, %16 : vector<256x128xf32>
    %c304 = arith.constant 304 : index
    %c0_17 = arith.constant 0 : index
    %18 = vector.load %arg1[%c304, %c0_17] : memref<576x16xbf16, #tpu.memory_space<vmem>>, vector<256x16xbf16>
    %c16_18 = arith.constant 16 : index
    %c0_19 = arith.constant 0 : index
    %19 = vector.load %arg3[%c16_18, %c0_19] : memref<560x128xbf16, #tpu.memory_space<vmem>>, vector<16x128xbf16>
    %cst_20 = arith.constant dense<0.000000e+00> : vector<256x128xf32>
    %20 = tpu.matmul %18, %19, %cst_20 {dimension_numbers = #tpu.dot_dimension_numbers<[1], [0], [0], [1], [0, 0, 1, 1], [], []>} : vector<256x16xbf16>, vector<16x128xbf16>, vector<256x128xf32> -> vector<256x128xf32>
    %21 = arith.addf %17, %20 : vector<256x128xf32>
    %c320 = arith.constant 320 : index
    %c0_21 = arith.constant 0 : index
    %22 = vector.load %arg1[%c320, %c0_21] : memref<576x16xbf16, #tpu.memory_space<vmem>>, vector<256x16xbf16>
    %c32_22 = arith.constant 32 : index
    %c0_23 = arith.constant 0 : index
    %23 = vector.load %arg3[%c32_22, %c0_23] : memref<560x128xbf16, #tpu.memory_space<vmem>>, vector<16x128xbf16>
    %cst_24 = arith.constant dense<0.000000e+00> : vector<256x128xf32>
    %24 = tpu.matmul %22, %23, %cst_24 {dimension_numbers = #tpu.dot_dimension_numbers<[1], [0], [0], [1], [0, 0, 1, 1], [], []>} : vector<256x16xbf16>, vector<16x128xbf16>, vector<256x128xf32> -> vector<256x128xf32>
    %25 = arith.addf %21, %24 : vector<256x128xf32>
    %cst_25 = arith.constant dense<0.000000e+00> : vector<128xf32>
    %26 = vector.multi_reduction <add>, %12, %cst_25 [0] : vector<256x128xf32> to vector<128xf32>
    %27 = vector.shape_cast %26 : vector<128xf32> to vector<1x128xf32>
    %cst_26 = arith.constant dense<0.000000e+00> : vector<128xf32>
    %28 = vector.multi_reduction <add>, %25, %cst_26 [0] : vector<256x128xf32> to vector<128xf32>
    %29 = vector.shape_cast %28 : vector<128xf32> to vector<1x128xf32>
    %30 = arith.addf %27, %29 : vector<1x128xf32>
    %31 = arith.mulf %12, %12 : vector<256x128xf32>
    %cst_27 = arith.constant dense<0.000000e+00> : vector<128xf32>
    %32 = vector.multi_reduction <add>, %31, %cst_27 [0] : vector<256x128xf32> to vector<128xf32>
    %33 = vector.shape_cast %32 : vector<128xf32> to vector<1x128xf32>
    %34 = arith.mulf %25, %25 : vector<256x128xf32>
    %cst_28 = arith.constant dense<0.000000e+00> : vector<128xf32>
    %35 = vector.multi_reduction <add>, %34, %cst_28 [0] : vector<256x128xf32> to vector<128xf32>
    %36 = vector.shape_cast %35 : vector<128xf32> to vector<1x128xf32>
    %37 = arith.addf %33, %36 : vector<1x128xf32>
    %cst_29 = arith.constant 0.001953125 : f32
    %38 = vector.broadcast %cst_29 : f32 to vector<1x128xf32>
    %39 = arith.mulf %30, %38 : vector<1x128xf32>
    %cst_30 = arith.constant 0.001953125 : f32
    %40 = vector.broadcast %cst_30 : f32 to vector<1x128xf32>
    %41 = arith.mulf %37, %40 : vector<1x128xf32>
    %42 = arith.mulf %39, %39 : vector<1x128xf32>
    %43 = arith.subf %41, %42 : vector<1x128xf32>
    %cst_31 = arith.constant 0.000000e+00 : f32
    %44 = vector.broadcast %cst_31 : f32 to vector<1x128xf32>
    %45 = arith.maximumf %43, %44 : vector<1x128xf32>
    %cst_32 = arith.constant 9.99999974E-6 : f32
    %46 = vector.broadcast %cst_32 : f32 to vector<1x128xf32>
    %47 = arith.addf %45, %46 : vector<1x128xf32>
    %48 = math.rsqrt %47 : vector<1x128xf32>
    %c0_33 = arith.constant 0 : index
    %c0_34 = arith.constant 0 : index
    %49 = vector.load %arg2[%c0_33, %c0_34] : memref<16x128xf32, #tpu.memory_space<vmem>>, vector<1x128xf32>
    %50 = arith.mulf %48, %49 : vector<1x128xf32>
    %c1 = arith.constant 1 : index
    %c0_35 = arith.constant 0 : index
    %51 = vector.load %arg2[%c1, %c0_35] : memref<16x128xf32, #tpu.memory_space<vmem>>, vector<1x128xf32>
    %52 = arith.mulf %39, %50 : vector<1x128xf32>
    %53 = arith.subf %51, %52 : vector<1x128xf32>
    %54 = vector.broadcast %50 : vector<1x128xf32> to vector<256x128xf32>
    %55 = arith.mulf %12, %54 : vector<256x128xf32>
    %56 = vector.broadcast %53 : vector<1x128xf32> to vector<256x128xf32>
    %57 = arith.addf %55, %56 : vector<256x128xf32>
    %cst_36 = arith.constant 0.000000e+00 : f32
    %58 = vector.broadcast %cst_36 : f32 to vector<256x128xf32>
    %59 = arith.maximumf %57, %58 : vector<256x128xf32>
    %cst_37 = arith.constant dense<0.000000e+00> : vector<128xf32>
    %60 = vector.multi_reduction <add>, %59, %cst_37 [0] : vector<256x128xf32> to vector<128xf32>
    %61 = vector.shape_cast %60 : vector<128xf32> to vector<1x128xf32>
    %cst_38 = arith.constant 3.906250e-03 : f32
    %62 = vector.broadcast %cst_38 : f32 to vector<1x128xf32>
    %63 = arith.mulf %61, %62 : vector<1x128xf32>
    %64 = vector.broadcast %50 : vector<1x128xf32> to vector<256x128xf32>
    %65 = arith.mulf %25, %64 : vector<256x128xf32>
    %66 = vector.broadcast %53 : vector<1x128xf32> to vector<256x128xf32>
    %67 = arith.addf %65, %66 : vector<256x128xf32>
    %cst_39 = arith.constant 0.000000e+00 : f32
    %68 = vector.broadcast %cst_39 : f32 to vector<256x128xf32>
    %69 = arith.maximumf %67, %68 : vector<256x128xf32>
    %cst_40 = arith.constant dense<0.000000e+00> : vector<128xf32>
    %70 = vector.multi_reduction <add>, %69, %cst_40 [0] : vector<256x128xf32> to vector<128xf32>
    %71 = vector.shape_cast %70 : vector<128xf32> to vector<1x128xf32>
    %cst_41 = arith.constant 3.906250e-03 : f32
    %72 = vector.broadcast %cst_41 : f32 to vector<1x128xf32>
    %73 = arith.mulf %71, %72 : vector<1x128xf32>
    %cst_42 = arith.constant 0.000000e+00 : f32
    %74 = vector.broadcast %cst_42 : f32 to vector<6x128xf32>
    %75 = tpu.concatenate %63, %73, %74 in 0 : vector<1x128xf32>, vector<1x128xf32>, vector<6x128xf32> -> vector<8x128xf32>
    %76 = arith.truncf %75 : vector<8x128xf32> to vector<8x128xbf16>
    %c48 = arith.constant 48 : index
    %c0_43 = arith.constant 0 : index
    %77 = vector.load %arg3[%c48, %c0_43] : memref<560x128xbf16, #tpu.memory_space<vmem>>, vector<128x128xbf16>
    %cst_44 = arith.constant dense<0.000000e+00> : vector<8x128xf32>
    %78 = tpu.matmul %76, %77, %cst_44 {dimension_numbers = #tpu.dot_dimension_numbers<[1], [0], [0], [1], [0, 0, 1, 1], [], []>} : vector<8x128xbf16>, vector<128x128xbf16>, vector<8x128xf32> -> vector<8x128xf32>
    %c2 = arith.constant 2 : index
    %c0_45 = arith.constant 0 : index
    %79 = vector.load %arg2[%c2, %c0_45] : memref<16x128xf32, #tpu.memory_space<vmem>>, vector<1x128xf32>
    %80 = vector.broadcast %79 : vector<1x128xf32> to vector<8x128xf32>
    %81 = arith.addf %78, %80 : vector<8x128xf32>
    %82 = vector.extract_strided_slice %81 {offsets = [0, 0], sizes = [2, 128], strides = [1, 1]} : vector<8x128xf32> to vector<2x128xf32>
    %cst_46 = arith.constant dense<0.000000e+00> : vector<128xf32>
    %83 = vector.multi_reduction <add>, %82, %cst_46 [0] : vector<2x128xf32> to vector<128xf32>
    %84 = vector.shape_cast %83 : vector<128xf32> to vector<1x128xf32>
    %cst_47 = arith.constant 5.000000e-01 : f32
    %85 = vector.broadcast %cst_47 : f32 to vector<1x128xf32>
    %86 = arith.mulf %84, %85 : vector<1x128xf32>
    %87 = arith.mulf %82, %82 : vector<2x128xf32>
    %cst_48 = arith.constant dense<0.000000e+00> : vector<128xf32>
    %88 = vector.multi_reduction <add>, %87, %cst_48 [0] : vector<2x128xf32> to vector<128xf32>
    %89 = vector.shape_cast %88 : vector<128xf32> to vector<1x128xf32>
    %cst_49 = arith.constant 5.000000e-01 : f32
    %90 = vector.broadcast %cst_49 : f32 to vector<1x128xf32>
    %91 = arith.mulf %89, %90 : vector<1x128xf32>
    %92 = arith.mulf %86, %86 : vector<1x128xf32>
    %93 = arith.subf %91, %92 : vector<1x128xf32>
    %cst_50 = arith.constant 0.000000e+00 : f32
    %94 = vector.broadcast %cst_50 : f32 to vector<1x128xf32>
    %95 = arith.maximumf %93, %94 : vector<1x128xf32>
    %cst_51 = arith.constant 9.99999974E-6 : f32
    %96 = vector.broadcast %cst_51 : f32 to vector<1x128xf32>
    %97 = arith.addf %95, %96 : vector<1x128xf32>
    %98 = math.rsqrt %97 : vector<1x128xf32>
    %c3 = arith.constant 3 : index
    %c0_52 = arith.constant 0 : index
    %99 = vector.load %arg2[%c3, %c0_52] : memref<16x128xf32, #tpu.memory_space<vmem>>, vector<1x128xf32>
    %100 = arith.mulf %98, %99 : vector<1x128xf32>
    %c4 = arith.constant 4 : index
    %c0_53 = arith.constant 0 : index
    %101 = vector.load %arg2[%c4, %c0_53] : memref<16x128xf32, #tpu.memory_space<vmem>>, vector<1x128xf32>
    %102 = arith.mulf %86, %100 : vector<1x128xf32>
    %103 = arith.subf %101, %102 : vector<1x128xf32>
    %104 = vector.broadcast %100 : vector<1x128xf32> to vector<8x128xf32>
    %105 = arith.mulf %81, %104 : vector<8x128xf32>
    %106 = vector.broadcast %103 : vector<1x128xf32> to vector<8x128xf32>
    %107 = arith.addf %105, %106 : vector<8x128xf32>
    %cst_54 = arith.constant 0.000000e+00 : f32
    %108 = vector.broadcast %cst_54 : f32 to vector<8x128xf32>
    %109 = arith.maximumf %107, %108 : vector<8x128xf32>
    %110 = arith.truncf %109 : vector<8x128xf32> to vector<8x128xbf16>
    %c176 = arith.constant 176 : index
    %c0_55 = arith.constant 0 : index
    %111 = vector.load %arg3[%c176, %c0_55] : memref<560x128xbf16, #tpu.memory_space<vmem>>, vector<128x128xbf16>
    %cst_56 = arith.constant dense<0.000000e+00> : vector<8x128xf32>
    %112 = tpu.matmul %110, %111, %cst_56 {dimension_numbers = #tpu.dot_dimension_numbers<[1], [0], [0], [1], [0, 0, 1, 1], [], []>} : vector<8x128xbf16>, vector<128x128xbf16>, vector<8x128xf32> -> vector<8x128xf32>
    %c5 = arith.constant 5 : index
    %c0_57 = arith.constant 0 : index
    %113 = vector.load %arg2[%c5, %c0_57] : memref<16x128xf32, #tpu.memory_space<vmem>>, vector<1x128xf32>
    %114 = vector.broadcast %113 : vector<1x128xf32> to vector<8x128xf32>
    %115 = arith.addf %112, %114 : vector<8x128xf32>
    %116 = vector.extract_strided_slice %115 {offsets = [0, 0], sizes = [2, 128], strides = [1, 1]} : vector<8x128xf32> to vector<2x128xf32>
    %cst_58 = arith.constant dense<0.000000e+00> : vector<128xf32>
    %117 = vector.multi_reduction <add>, %116, %cst_58 [0] : vector<2x128xf32> to vector<128xf32>
    %118 = vector.shape_cast %117 : vector<128xf32> to vector<1x128xf32>
    %cst_59 = arith.constant 5.000000e-01 : f32
    %119 = vector.broadcast %cst_59 : f32 to vector<1x128xf32>
    %120 = arith.mulf %118, %119 : vector<1x128xf32>
    %121 = arith.mulf %116, %116 : vector<2x128xf32>
    %cst_60 = arith.constant dense<0.000000e+00> : vector<128xf32>
    %122 = vector.multi_reduction <add>, %121, %cst_60 [0] : vector<2x128xf32> to vector<128xf32>
    %123 = vector.shape_cast %122 : vector<128xf32> to vector<1x128xf32>
    %cst_61 = arith.constant 5.000000e-01 : f32
    %124 = vector.broadcast %cst_61 : f32 to vector<1x128xf32>
    %125 = arith.mulf %123, %124 : vector<1x128xf32>
    %126 = arith.mulf %120, %120 : vector<1x128xf32>
    %127 = arith.subf %125, %126 : vector<1x128xf32>
    %cst_62 = arith.constant 0.000000e+00 : f32
    %128 = vector.broadcast %cst_62 : f32 to vector<1x128xf32>
    %129 = arith.maximumf %127, %128 : vector<1x128xf32>
    %cst_63 = arith.constant 9.99999974E-6 : f32
    %130 = vector.broadcast %cst_63 : f32 to vector<1x128xf32>
    %131 = arith.addf %129, %130 : vector<1x128xf32>
    %132 = math.rsqrt %131 : vector<1x128xf32>
    %c6 = arith.constant 6 : index
    %c0_64 = arith.constant 0 : index
    %133 = vector.load %arg2[%c6, %c0_64] : memref<16x128xf32, #tpu.memory_space<vmem>>, vector<1x128xf32>
    %134 = arith.mulf %132, %133 : vector<1x128xf32>
    %c7 = arith.constant 7 : index
    %c0_65 = arith.constant 0 : index
    %135 = vector.load %arg2[%c7, %c0_65] : memref<16x128xf32, #tpu.memory_space<vmem>>, vector<1x128xf32>
    %136 = arith.mulf %120, %134 : vector<1x128xf32>
    %137 = arith.subf %135, %136 : vector<1x128xf32>
    %138 = vector.broadcast %134 : vector<1x128xf32> to vector<8x128xf32>
    %139 = arith.mulf %115, %138 : vector<8x128xf32>
    %140 = vector.broadcast %137 : vector<1x128xf32> to vector<8x128xf32>
    %141 = arith.addf %139, %140 : vector<8x128xf32>
    %cst_66 = arith.constant 0.000000e+00 : f32
    %142 = vector.broadcast %cst_66 : f32 to vector<8x128xf32>
    %143 = arith.maximumf %141, %142 : vector<8x128xf32>
    %144 = arith.truncf %143 : vector<8x128xf32> to vector<8x128xbf16>
    %c304_67 = arith.constant 304 : index
    %c0_68 = arith.constant 0 : index
    %145 = vector.load %arg3[%c304_67, %c0_68] : memref<560x128xbf16, #tpu.memory_space<vmem>>, vector<128x128xbf16>
    %cst_69 = arith.constant dense<0.000000e+00> : vector<8x128xf32>
    %146 = tpu.matmul %144, %145, %cst_69 {dimension_numbers = #tpu.dot_dimension_numbers<[1], [0], [0], [1], [0, 0, 1, 1], [], []>} : vector<8x128xbf16>, vector<128x128xbf16>, vector<8x128xf32> -> vector<8x128xf32>
    %c8 = arith.constant 8 : index
    %c0_70 = arith.constant 0 : index
    %147 = vector.load %arg2[%c8, %c0_70] : memref<16x128xf32, #tpu.memory_space<vmem>>, vector<1x128xf32>
    %148 = vector.broadcast %147 : vector<1x128xf32> to vector<8x128xf32>
    %149 = arith.addf %146, %148 : vector<8x128xf32>
    %150 = arith.mulf %149, %149 : vector<8x128xf32>
    %cst_71 = arith.constant dense<0.000000e+00> : vector<8xf32>
    %151 = vector.multi_reduction <add>, %150, %cst_71 [1] : vector<8x128xf32> to vector<8xf32>
    %152 = vector.shape_cast %151 : vector<8xf32> to vector<8x1xf32>
    %cst_72 = arith.constant 9.99999996E-13 : f32
    %153 = vector.broadcast %cst_72 : f32 to vector<8x1xf32>
    %154 = arith.addf %152, %153 : vector<8x1xf32>
    %155 = math.rsqrt %154 : vector<8x1xf32>
    %cst_73 = arith.constant 2.000000e+01 : f32
    %156 = vector.broadcast %cst_73 : f32 to vector<8x1xf32>
    %157 = arith.mulf %155, %156 : vector<8x1xf32>
    %158 = vector.broadcast %157 : vector<8x1xf32> to vector<8x128xf32>
    %159 = arith.mulf %149, %158 : vector<8x128xf32>
    %c432 = arith.constant 432 : index
    %c0_74 = arith.constant 0 : index
    %160 = vector.load %arg3[%c432, %c0_74] : memref<560x128xbf16, #tpu.memory_space<vmem>>, vector<128x128xbf16>
    %161 = arith.extf %160 : vector<128x128xbf16> to vector<128x128xf32>
    %162 = arith.mulf %161, %161 : vector<128x128xf32>
    %cst_75 = arith.constant dense<0.000000e+00> : vector<128xf32>
    %163 = vector.multi_reduction <add>, %162, %cst_75 [0] : vector<128x128xf32> to vector<128xf32>
    %164 = vector.shape_cast %163 : vector<128xf32> to vector<1x128xf32>
    %cst_76 = arith.constant 9.99999996E-13 : f32
    %165 = vector.broadcast %cst_76 : f32 to vector<1x128xf32>
    %166 = arith.addf %164, %165 : vector<1x128xf32>
    %167 = math.rsqrt %166 : vector<1x128xf32>
    %168 = vector.broadcast %167 : vector<1x128xf32> to vector<128x128xf32>
    %169 = arith.mulf %161, %168 : vector<128x128xf32>
    %170 = arith.truncf %159 : vector<8x128xf32> to vector<8x128xbf16>
    %171 = arith.truncf %169 : vector<128x128xf32> to vector<128x128xbf16>
    %cst_77 = arith.constant dense<0.000000e+00> : vector<8x128xf32>
    %172 = tpu.matmul %170, %171, %cst_77 {dimension_numbers = #tpu.dot_dimension_numbers<[1], [0], [0], [1], [0, 0, 1, 1], [], []>} : vector<8x128xbf16>, vector<128x128xbf16>, vector<8x128xf32> -> vector<8x128xf32>
    %c0_78 = arith.constant 0 : index
    %c0_79 = arith.constant 0 : index
    %173 = vector.load %arg4[%c0_78, %c0_79] : memref<8x128xf32, #tpu.memory_space<vmem>>, vector<8x128xf32>
    tpu.vector_store %arg4[%c0_78, %c0_79], %172 {strides = array<i32>} : memref<8x128xf32, #tpu.memory_space<vmem>>, vector<8x128xf32>,
    return
  }
  func.func @transform_0(%arg0: i32) -> (i32, i32) {
    %c0_i32 = arith.constant 0 : i32
    %c0_i32_0 = arith.constant 0 : i32
    %c0_i32_1 = arith.constant 0 : i32
    return %c0_i32, %c0_i32_0 : i32, i32
  }
  func.func @transform_1(%arg0: i32) -> (i32, i32) {
    %c0_i32 = arith.constant 0 : i32
    %c0_i32_0 = arith.constant 0 : i32
    %c0_i32_1 = arith.constant 0 : i32
    return %c0_i32, %c0_i32_0 : i32, i32
  }
  func.func @transform_2(%arg0: i32) -> (i32, i32) {
    %c0_i32 = arith.constant 0 : i32
    %c0_i32_0 = arith.constant 0 : i32
    %c0_i32_1 = arith.constant 0 : i32
    return %c0_i32, %c0_i32_0 : i32, i32
  }
  func.func @transform_3(%arg0: i32) -> (i32, i32) {
    %c0_i32 = arith.constant 0 : i32
    %c0_i32_0 = arith.constant 0 : i32
    %c0_i32_1 = arith.constant 0 : i32
    return %c0_i32, %c0_i32_0 : i32, i32
  }
}

</mosaic_0001>

<llo_original>
// kernel: training_model_forward.1
$region0: #{training_model_forward.1}
  #allocation0 [shape = 'u32[]', space=smem, size = 0x4, offset = 0x4, fixed_abs, tag = 'smem constant byte address 0x4 - core index']
  #allocation1 [shape = 'u32[144,128]{1,0:T(1,128)}', space=vmem, size = 0x12000, scoped, tag = 'internal scratch']
  %s0 = inlined_call_operand.vmem [shape: bf16[576,16], index: 0, kind: input, shape index: {}]
  %s1 = inlined_call_operand.vmem [shape: f32[16,128], index: 1, kind: input, shape index: {}]
  %s2 = inlined_call_operand.vmem [shape: bf16[560,128], index: 2, kind: input, shape index: {}]
  %s3 = inlined_call_operand.vmem [shape: f32[8,128], index: 3, kind: output, shape index: {}]
  %s4 = sld [smem:[#allocation0]]
  $region22: #{training_model_forward.1} parent=0
    _
  %s6 = ssub.s32 1, %s4
  %s7 = scalar_select 0, %s6, %s4
  // Predicated region
  $region2: #{training_model_forward.1} parent=0 // pred_check
    _
  $region3: #{training_model_forward.1} parent=0 // pred_check_branch
    %9 = sbr.rel (0) target = $region5
  $region4: #{training_model_forward.1} parent=0 // pred_region
    _
  $region5: #{training_model_forward.1} parent=0 // pred_fallthru
    _
  // Predicated region
  $region6: #{training_model_forward.1} parent=0 // pred_check
    _
  $region7: #{training_model_forward.1} parent=0 // pred_check_branch
    %11 = sbr.rel (0) target = $region9
  $region8: #{training_model_forward.1} parent=0 // pred_region
    _
  $region9: #{training_model_forward.1} parent=0 // pred_fallthru
    _
  // Predicated region
  $region10: #{training_model_forward.1} parent=0 // pred_check
    _
  $region11: #{training_model_forward.1} parent=0 // pred_check_branch
    %13 = sbr.rel (0) target = $region13
  $region12: #{training_model_forward.1} parent=0 // pred_region
    _
  $region13: #{training_model_forward.1} parent=0 // pred_fallthru
    _
  %v15 = vld [vmem:[%s0] sm:$0xf]
  %v16 = vld [vmem:[%s0 + $0x4] sm:$0xf]
  %v17 = vld [vmem:[%s0 + $0x8] sm:$0xf]
  %v18 = vld [vmem:[%s0 + $0xc] sm:$0xf]
  %v19 = vld [vmem:[%s0 + $0x10] sm:$0xf]
  %v20 = vld [vmem:[%s0 + $0x14] sm:$0xf]
  %v21 = vld [vmem:[%s0 + $0x18] sm:$0xf]
  %v22 = vld [vmem:[%s0 + $0x1c] sm:$0xf]
  %v23 = vld [vmem:[%s0 + $0x20] sm:$0xf]
  %v24 = vld [vmem:[%s0 + $0x24] sm:$0xf]
  %v25 = vld [vmem:[%s0 + $0x28] sm:$0xf]
  %v26 = vld [vmem:[%s0 + $0x2c] sm:$0xf]
  %v27 = vld [vmem:[%s0 + $0x30] sm:$0xf]
  %v28 = vld [vmem:[%s0 + $0x34] sm:$0xf]
  %v29 = vld [vmem:[%s0 + $0x38] sm:$0xf]
  %v30 = vld [vmem:[%s0 + $0x3c] sm:$0xf]
  %v31 = vld [vmem:[%s0 + $0x40] sm:$0xf]
  %v32 = vld [vmem:[%s0 + $0x44] sm:$0xf]
  %v33 = vld [vmem:[%s0 + $0x48] sm:$0xf]
  %v34 = vld [vmem:[%s0 + $0x4c] sm:$0xf]
  %v35 = vld [vmem:[%s0 + $0x50] sm:$0xf]
  %v36 = vld [vmem:[%s0 + $0x54] sm:$0xf]
  %v37 = vld [vmem:[%s0 + $0x58] sm:$0xf]
  %v38 = vld [vmem:[%s0 + $0x5c] sm:$0xf]
  %v39 = vld [vmem:[%s0 + $0x60] sm:$0xf]
  %v40 = vld [vmem:[%s0 + $0x64] sm:$0xf]
  %v41 = vld [vmem:[%s0 + $0x68] sm:$0xf]
  %v42 = vld [vmem:[%s0 + $0x6c] sm:$0xf]
  %v43 = vld [vmem:[%s0 + $0x70] sm:$0xf]
  %v44 = vld [vmem:[%s0 + $0x74] sm:$0xf]
  %v45 = vld [vmem:[%s0 + $0x78] sm:$0xf]
  %v46 = vld [vmem:[%s0 + $0x7c] sm:$0xf]
  %v47 = vld [vmem:[%s2] sm:$0xf]
  %v48 = vld [vmem:[%s2 + $0x4] sm:$0xf]
  %v49 = vld [vmem:[%s0 + $0x80] sm:$0xf]
  %v50 = vld [vmem:[%s0 + $0x84] sm:$0xf]
  %v51 = vld [vmem:[%s2 + $0x8] sm:$0xf]
  %v52 = vld [vmem:[%s2 + $0xc] sm:$0xf]
  %v85 = vunpack.c.l.b16 %v17
  %v86 = vunpack.c.l.b16 %v18
  %v87 = vunpack.c.l.b16 %v19
  %v88 = vunpack.c.l.b16 %v20
  %v89 = vunpack.c.l.b16 %v21
  %v90 = vunpack.c.l.b16 %v22
  %v91 = vunpack.c.l.b16 %v23
  %v92 = vunpack.c.l.b16 %v24
  %v93 = vunpack.c.l.b16 %v25
  %v94 = vunpack.c.l.b16 %v26
  %v95 = vunpack.c.l.b16 %v27
  %v96 = vunpack.c.l.b16 %v28
  %v97 = vunpack.c.l.b16 %v29
  %v98 = vunpack.c.l.b16 %v30
  %v99 = vunpack.c.l.b16 %v31
  %v100 = vunpack.c.l.b16 %v32
  %v101 = vunpack.c.l.b16 %v33
  %v102 = vunpack.c.l.b16 %v34
  %v103 = vunpack.c.l.b16 %v35
  %v104 = vunpack.c.l.b16 %v36
  %v105 = vunpack.c.l.b16 %v37
  %v106 = vunpack.c.l.b16 %v38
  %v107 = vunpack.c.l.b16 %v39
  %v108 = vunpack.c.l.b16 %v40
  %v109 = vunpack.c.l.b16 %v41
  %v110 = vunpack.c.l.b16 %v42
  %v111 = vunpack.c.l.b16 %v43
  %v112 = vunpack.c.l.b16 %v44
  %v113 = vunpack.c.l.b16 %v45
  %v114 = vunpack.c.l.b16 %v46
  %v115 = vunpack.c.l.b16 %v49
  %v116 = vunpack.c.l.b16 %v50
  %v117 = vpack.c.b16 %v86, %v85
  %v118 = vpack.c.b16 %v88, %v87
  %v119 = vpack.c.b16 %v90, %v89
  %v120 = vpack.c.b16 %v92, %v91
  %v121 = vpack.c.b16 %v94, %v93
  %v122 = vpack.c.b16 %v96, %v95
  %v123 = vpack.c.b16 %v98, %v97
  %v124 = vpack.c.b16 %v100, %v99
  %v125 = vpack.c.b16 %v102, %v101
  %v126 = vpack.c.b16 %v104, %v103
  %v127 = vpack.c.b16 %v106, %v105
  %v128 = vpack.c.b16 %v108, %v107
  %v129 = vpack.c.b16 %v110, %v109
  %v130 = vpack.c.b16 %v112, %v111
  %v131 = vpack.c.b16 %v114, %v113
  %v132 = vpack.c.b16 %v116, %v115
  %v135 = vunpack.c.l.b16 %v51
  %v136 = vunpack.c.l.b16 %v52
  %v137 = vpack.c.b16 %v136, %v135
  %vm139 = vcmask 130048
  %v141 = vsel %vm139, %v117, 0
  %v144 = vsel %vm139, %v118, 0
  %v147 = vsel %vm139, %v119, 0
  %v150 = vsel %vm139, %v120, 0
  %v153 = vsel %vm139, %v121, 0
  %v156 = vsel %vm139, %v122, 0
  %v159 = vsel %vm139, %v123, 0
  %v162 = vsel %vm139, %v124, 0
  %v165 = vsel %vm139, %v125, 0
  %v168 = vsel %vm139, %v126, 0
  %v171 = vsel %vm139, %v127, 0
  %v174 = vsel %vm139, %v128, 0
  %v177 = vsel %vm139, %v129, 0
  %v180 = vsel %vm139, %v130, 0
  %v183 = vsel %vm139, %v131, 0
  %v186 = vsel %vm139, %v132, 0
  %188 = vmatprep.subr.bf16.mxu0 0
  %189 = vmatpush1.bf16.msra.mxu0 %v137
  %190 = vmatprep.subr.bf16.mxu0 0
  %191 = vmatpush1.bf16.msra.mxu0 0
  %192 = vmatprep.subr.bf16.mxu0 0
  %193 = vmatpush1.bf16.msra.mxu0 0
  %194 = vmatprep.subr.bf16.mxu0 0
  %195 = vmatpush1.bf16.msra.mxu0 0
  %196 = vmatprep.subr.bf16.mxu0 0
  %197 = vmatpush1.bf16.msra.mxu0 0
  %198 = vmatprep.subr.bf16.mxu0 0
  %199 = vmatpush1.bf16.msra.mxu0 0
  %200 = vmatprep.subr.bf16.mxu0 0
  %201 = vmatpush1.bf16.msra.mxu0 0
  %202 = vmatprep.subr.bf16.mxu0 0
  %203 = vmatpush1.bf16.msra.mxu0 0
  %204 = vmatprep.subr.bf16.mxu0 0
  %205 = vmatpush1.bf16.msra.mxu0 0
  %206 = vmatprep.subr.bf16.mxu0 0
  %207 = vmatpush1.bf16.msra.mxu0 0
  %208 = vmatprep.subr.bf16.mxu0 0
  %209 = vmatpush1.bf16.msra.mxu0 0
  %210 = vmatprep.subr.bf16.mxu0 0
  %211 = vmatpush1.bf16.msra.mxu0 0
  %212 = vmatprep.subr.bf16.mxu0 0
  %213 = vmatpush1.bf16.msra.mxu0 0
  %214 = vmatprep.subr.bf16.mxu0 0
  %215 = vmatpush1.bf16.msra.mxu0 0
  %216 = vmatprep.subr.bf16.mxu0 0
  %217 = vmatpush1.bf16.msra.mxu0 0
  %218 = vmatprep.subr.bf16.mxu0 0
  %219 = vmatpush1.bf16.msra.mxu0 0
  %220 = vmatprep.mubr.bf16.mxu0 0
  %221 = vmatmul.mubr.bf16.gmra.mrb[0].mxu0 %v141
  %v222 = vpop.f32.mrb[0].mxu0
  %v223 = vadd.f32 0.0, %v222
  %v224 = vpop.f32.mrb[0].mxu0
  %v225 = vpop.f32.mrb[0].mxu0
  %v226 = vadd.f32 0.0, %v225
  %v227 = vpop.f32.mrb[0].mxu0
  %228 = vmatprep.mubr.bf16.mxu0 0
  %229 = vmatmul.mubr.bf16.gmra.mrb[0].mxu0 %v144
  %v230 = vpop.f32.mrb[0].mxu0
  %v231 = vadd.f32 0.0, %v230
  %v232 = vpop.f32.mrb[0].mxu0
  %v233 = vpop.f32.mrb[0].mxu0
  %v234 = vadd.f32 0.0, %v233
  %v235 = vpop.f32.mrb[0].mxu0
  %236 = vmatprep.mubr.bf16.mxu0 0
  %237 = vmatmul.mubr.bf16.gmra.mrb[0].mxu0 %v147
  %v238 = vpop.f32.mrb[0].mxu0
  %v239 = vadd.f32 0.0, %v238
  %v240 = vpop.f32.mrb[0].mxu0
  %v241 = vpop.f32.mrb[0].mxu0
  %v242 = vadd.f32 0.0, %v241
  %v243 = vpop.f32.mrb[0].mxu0
  %244 = vmatprep.mubr.bf16.mxu0 0
  %245 = vmatmul.mubr.bf16.gmra.mrb[0].mxu0 %v150
  %v246 = vpop.f32.mrb[0].mxu0
  %v247 = vadd.f32 0.0, %v246
  %v248 = vpop.f32.mrb[0].mxu0
  %v249 = vpop.f32.mrb[0].mxu0
  %v250 = vadd.f32 0.0, %v249
  %v251 = vpop.f32.mrb[0].mxu0
  %252 = vmatprep.mubr.bf16.mxu0 0
  %253 = vmatmul.mubr.bf16.gmra.mrb[0].mxu0 %v153
  %v254 = vpop.f32.mrb[0].mxu0
  %v255 = vadd.f32 0.0, %v254
  %v256 = vpop.f32.mrb[0].mxu0
  %v257 = vpop.f32.mrb[0].mxu0
  %v258 = vadd.f32 0.0, %v257
  %v259 = vpop.f32.mrb[0].mxu0
  %260 = vmatprep.mubr.bf16.mxu0 0
  %261 = vmatmul.mubr.bf16.gmra.mrb[0].mxu0 %v156
  %v262 = vpop.f32.mrb[0].mxu0
  %v263 = vadd.f32 0.0, %v262
  %v264 = vpop.f32.mrb[0].mxu0
  %v265 = vpop.f32.mrb[0].mxu0
  %v266 = vadd.f32 0.0, %v265
  %v267 = vpop.f32.mrb[0].mxu0
  %268 = vmatprep.mubr.bf16.mxu0 0
  %269 = vmatmul.mubr.bf16.gmra.mrb[0].mxu0 %v159
  %v270 = vpop.f32.mrb[0].mxu0
  %v271 = vadd.f32 0.0, %v270
  %v272 = vpop.f32.mrb[0].mxu0
  %v273 = vpop.f32.mrb[0].mxu0
  %v274 = vadd.f32 0.0, %v273
  %v275 = vpop.f32.mrb[0].mxu0
  %276 = vmatprep.mubr.bf16.mxu0 0
  %277 = vmatmul.mubr.bf16.gmra.mrb[0].mxu0 %v162
  %v278 = vpop.f32.mrb[0].mxu0
  %v279 = vadd.f32 0.0, %v278
  %v280 = vpop.f32.mrb[0].mxu0
  %v281 = vpop.f32.mrb[0].mxu0
  %v282 = vadd.f32 0.0, %v281
  %v283 = vpop.f32.mrb[0].mxu0
  %284 = vmatprep.mubr.bf16.mxu0 0
  %285 = vmatmul.mubr.bf16.gmra.mrb[0].mxu0 %v165
  %v286 = vpop.f32.mrb[0].mxu0
  %v287 = vadd.f32 0.0, %v286
  %v288 = vpop.f32.mrb[0].mxu0
  %v289 = vpop.f32.mrb[0].mxu0
  %v290 = vadd.f32 0.0, %v289
  %v291 = vpop.f32.mrb[0].mxu0
  %292 = vmatprep.mubr.bf16.mxu0 0
  %293 = vmatmul.mubr.bf16.gmra.mrb[0].mxu0 %v168
  %v294 = vpop.f32.mrb[0].mxu0
  %v295 = vadd.f32 0.0, %v294
  %v296 = vpop.f32.mrb[0].mxu0
  %v297 = vpop.f32.mrb[0].mxu0
  %v298 = vadd.f32 0.0, %v297
  %v299 = vpop.f32.mrb[0].mxu0
  %300 = vmatprep.mubr.bf16.mxu0 0
  %301 = vmatmul.mubr.bf16.gmra.mrb[0].mxu0 %v171
  %v302 = vpop.f32.mrb[0].mxu0
  %v303 = vadd.f32 0.0, %v302
  %v304 = vpop.f32.mrb[0].mxu0
  %v305 = vpop.f32.mrb[0].mxu0
  %v306 = vadd.f32 0.0, %v305
  %v307 = vpop.f32.mrb[0].mxu0
  %308 = vmatprep.mubr.bf16.mxu0 0
  %309 = vmatmul.mubr.bf16.gmra.mrb[0].mxu0 %v174
  %v310 = vpop.f32.mrb[0].mxu0
  %v311 = vadd.f32 0.0, %v310
  %v312 = vpop.f32.mrb[0].mxu0
  %v313 = vpop.f32.mrb[0].mxu0
  %v314 = vadd.f32 0.0, %v313
  %v315 = vpop.f32.mrb[0].mxu0
  %316 = vmatprep.mubr.bf16.mxu0 0
  %317 = vmatmul.mubr.bf16.gmra.mrb[0].mxu0 %v177
  %v318 = vpop.f32.mrb[0].mxu0
  %v319 = vadd.f32 0.0, %v318
  %v320 = vpop.f32.mrb[0].mxu0
  %v321 = vpop.f32.mrb[0].mxu0
  %v322 = vadd.f32 0.0, %v321
  %v323 = vpop.f32.mrb[0].mxu0
  %324 = vmatprep.mubr.bf16.mxu0 0
  %325 = vmatmul.mubr.bf16.gmra.mrb[0].mxu0 %v180
  %v326 = vpop.f32.mrb[0].mxu0
  %v327 = vadd.f32 0.0, %v326
  %v328 = vpop.f32.mrb[0].mxu0
  %v329 = vpop.f32.mrb[0].mxu0
  %v330 = vadd.f32 0.0, %v329
  %v331 = vpop.f32.mrb[0].mxu0
  %332 = vmatprep.mubr.bf16.mxu0 0
  %333 = vmatmul.mubr.bf16.gmra.mrb[0].mxu0 %v183
  %v334 = vpop.f32.mrb[0].mxu0
  %v335 = vadd.f32 0.0, %v334
  %v336 = vpop.f32.mrb[0].mxu0
  %v337 = vpop.f32.mrb[0].mxu0
  %v338 = vadd.f32 0.0, %v337
  %v339 = vpop.f32.mrb[0].mxu0
  %340 = vmatprep.mubr.bf16.mxu0 0
  %341 = vmatmul.mubr.bf16.gmra.mrb[0].mxu0 %v186
  %v342 = vpop.f32.mrb[0].mxu0
  %v343 = vadd.f32 0.0, %v342
  %v344 = vpop.f32.mrb[0].mxu0
  %v345 = vpop.f32.mrb[0].mxu0
  %v346 = vadd.f32 0.0, %v345
  %v347 = vpop.f32.mrb[0].mxu0
  %348 = vdwg.mxu0
  %v351 = vunpack.c.l.b16 %v15
  %v352 = vunpack.c.l.b16 %v16
  %v353 = vpack.c.b16 %v352, %v351
  %v356 = vunpack.c.l.b16 %v47
  %v357 = vunpack.c.l.b16 %v48
  %v358 = vpack.c.b16 %v357, %v356
  %v361 = vsel %vm139, %v353, 0
  %363 = vmatprep.subr.bf16.mxu0 0
  %364 = vmatpush1.bf16.msra.mxu0 %v358
  %365 = vmatprep.subr.bf16.mxu0 0
  %366 = vmatpush1.bf16.msra.mxu0 0
  %367 = vmatprep.subr.bf16.mxu0 0
  %368 = vmatpush1.bf16.msra.mxu0 0
  %369 = vmatprep.subr.bf16.mxu0 0
  %370 = vmatpush1.bf16.msra.mxu0 0
  %371 = vmatprep.subr.bf16.mxu0 0
  %372 = vmatpush1.bf16.msra.mxu0 0
  %373 = vmatprep.subr.bf16.mxu0 0
  %374 = vmatpush1.bf16.msra.mxu0 0
  %375 = vmatprep.subr.bf16.mxu0 0
  %376 = vmatpush1.bf16.msra.mxu0 0
  %377 = vmatprep.subr.bf16.mxu0 0
  %378 = vmatpush1.bf16.msra.mxu0 0
  %379 = vmatprep.subr.bf16.mxu0 0
  %380 = vmatpush1.bf16.msra.mxu0 0
  %381 = vmatprep.subr.bf16.mxu0 0
  %382 = vmatpush1.bf16.msra.mxu0 0
  %383 = vmatprep.subr.bf16.mxu0 0
  %384 = vmatpush1.bf16.msra.mxu0 0
  %385 = vmatprep.subr.bf16.mxu0 0
  %386 = vmatpush1.bf16.msra.mxu0 0
  %387 = vmatprep.subr.bf16.mxu0 0
  %388 = vmatpush1.bf16.msra.mxu0 0
  %389 = vmatprep.subr.bf16.mxu0 0
  %390 = vmatpush1.bf16.msra.mxu0 0
  %391 = vmatprep.subr.bf16.mxu0 0
  %392 = vmatpush1.bf16.msra.mxu0 0
  %393 = vmatprep.subr.bf16.mxu0 0
  %394 = vmatpush1.bf16.msra.mxu0 0
  %395 = vmatprep.mubr.bf16.mxu0 0
  %396 = vmatmul.mubr.bf16.gmra.mrb[0].mxu0 %v361
  %v397 = vpop.f32.mrb[0].mxu0
  %v398 = vadd.f32 %v223, %v397
  %v399 = vpop.f32.mrb[0].mxu0
  %v400 = vpop.f32.mrb[0].mxu0
  %v401 = vadd.f32 %v226, %v400
  %v402 = vpop.f32.mrb[0].mxu0
  %403 = vmatprep.mubr.bf16.mxu0 0
  %404 = vmatmul.mubr.bf16.gmra.mrb[0].mxu0 %v141
  %v405 = vpop.f32.mrb[0].mxu0
  %v406 = vadd.f32 %v231, %v405
  %v407 = vpop.f32.mrb[0].mxu0
  %v408 = vpop.f32.mrb[0].mxu0
  %v409 = vadd.f32 %v234, %v408
  %v410 = vpop.f32.mrb[0].mxu0
  %411 = vmatprep.mubr.bf16.mxu0 0
  %412 = vmatmul.mubr.bf16.gmra.mrb[0].mxu0 %v144
  %v413 = vpop.f32.mrb[0].mxu0
  %v414 = vadd.f32 %v239, %v413
  %v415 = vpop.f32.mrb[0].mxu0
  %v416 = vpop.f32.mrb[0].mxu0
  %v417 = vadd.f32 %v242, %v416
  %v418 = vpop.f32.mrb[0].mxu0
  %419 = vmatprep.mubr.bf16.mxu0 0
  %420 = vmatmul.mubr.bf16.gmra.mrb[0].mxu0 %v147
  %v421 = vpop.f32.mrb[0].mxu0
  %v422 = vadd.f32 %v247, %v421
  %v423 = vpop.f32.mrb[0].mxu0
  %v424 = vpop.f32.mrb[0].mxu0
  %v425 = vadd.f32 %v250, %v424
  %v426 = vpop.f32.mrb[0].mxu0
  %427 = vmatprep.mubr.bf16.mxu0 0
  %428 = vmatmul.mubr.bf16.gmra.mrb[0].mxu0 %v150
  %v429 = vpop.f32.mrb[0].mxu0
  %v430 = vadd.f32 %v255, %v429
  %v431 = vpop.f32.mrb[0].mxu0
  %v432 = vpop.f32.mrb[0].mxu0
  %v433 = vadd.f32 %v258, %v432
  %v434 = vpop.f32.mrb[0].mxu0
  %435 = vmatprep.mubr.bf16.mxu0 0
  %436 = vmatmul.mubr.bf16.gmra.mrb[0].mxu0 %v153
  %v437 = vpop.f32.mrb[0].mxu0
  %v438 = vadd.f32 %v263, %v437
  %v439 = vpop.f32.mrb[0].mxu0
  %v440 = vpop.f32.mrb[0].mxu0
  %v441 = vadd.f32 %v266, %v440
  %v442 = vpop.f32.mrb[0].mxu0
  %443 = vmatprep.mubr.bf16.mxu0 0
  %444 = vmatmul.mubr.bf16.gmra.mrb[0].mxu0 %v156
  %v445 = vpop.f32.mrb[0].mxu0
  %v446 = vadd.f32 %v271, %v445
  %v447 = vpop.f32.mrb[0].mxu0
  %v448 = vpop.f32.mrb[0].mxu0
  %v449 = vadd.f32 %v274, %v448
  %v450 = vpop.f32.mrb[0].mxu0
  %451 = vmatprep.mubr.bf16.mxu0 0
  %452 = vmatmul.mubr.bf16.gmra.mrb[0].mxu0 %v159
  %v453 = vpop.f32.mrb[0].mxu0
  %v454 = vadd.f32 %v279, %v453
  %v455 = vpop.f32.mrb[0].mxu0
  %v456 = vpop.f32.mrb[0].mxu0
  %v457 = vadd.f32 %v282, %v456
  %v458 = vpop.f32.mrb[0].mxu0
  %459 = vmatprep.mubr.bf16.mxu0 0
  %460 = vmatmul.mubr.bf16.gmra.mrb[0].mxu0 %v162
  %v461 = vpop.f32.mrb[0].mxu0
  %v462 = vadd.f32 %v287, %v461
  %v463 = vpop.f32.mrb[0].mxu0
  %v464 = vpop.f32.mrb[0].mxu0
  %v465 = vadd.f32 %v290, %v464
  %v466 = vpop.f32.mrb[0].mxu0
  %467 = vmatprep.mubr.bf16.mxu0 0
  %468 = vmatmul.mubr.bf16.gmra.mrb[0].mxu0 %v165
  %v469 = vpop.f32.mrb[0].mxu0
  %v470 = vadd.f32 %v295, %v469
  %v471 = vpop.f32.mrb[0].mxu0
  %v472 = vpop.f32.mrb[0].mxu0
  %v473 = vadd.f32 %v298, %v472
  %v474 = vpop.f32.mrb[0].mxu0
  %475 = vmatprep.mubr.bf16.mxu0 0
  %476 = vmatmul.mubr.bf16.gmra.mrb[0].mxu0 %v168
  %v477 = vpop.f32.mrb[0].mxu0
  %v478 = vadd.f32 %v303, %v477
  %v479 = vpop.f32.mrb[0].mxu0
  %v480 = vpop.f32.mrb[0].mxu0
  %v481 = vadd.f32 %v306, %v480
  %v482 = vpop.f32.mrb[0].mxu0
  %483 = vmatprep.mubr.bf16.mxu0 0
  %484 = vmatmul.mubr.bf16.gmra.mrb[0].mxu0 %v171
  %v485 = vpop.f32.mrb[0].mxu0
  %v486 = vadd.f32 %v311, %v485
  %v487 = vpop.f32.mrb[0].mxu0
  %v488 = vpop.f32.mrb[0].mxu0
  %v489 = vadd.f32 %v314, %v488
  %v490 = vpop.f32.mrb[0].mxu0
  %491 = vmatprep.mubr.bf16.mxu0 0
  %492 = vmatmul.mubr.bf16.gmra.mrb[0].mxu0 %v174
  %v493 = vpop.f32.mrb[0].mxu0
  %v494 = vadd.f32 %v319, %v493
  %v495 = vpop.f32.mrb[0].mxu0
  %v496 = vpop.f32.mrb[0].mxu0
  %v497 = vadd.f32 %v322, %v496
  %v498 = vpop.f32.mrb[0].mxu0
  %499 = vmatprep.mubr.bf16.mxu0 0
  %500 = vmatmul.mubr.bf16.gmra.mrb[0].mxu0 %v177
  %v501 = vpop.f32.mrb[0].mxu0
  %v502 = vadd.f32 %v327, %v501
  %v503 = vpop.f32.mrb[0].mxu0
  %v504 = vpop.f32.mrb[0].mxu0
  %v505 = vadd.f32 %v330, %v504
  %v506 = vpop.f32.mrb[0].mxu0
  %507 = vmatprep.mubr.bf16.mxu0 0
  %508 = vmatmul.mubr.bf16.gmra.mrb[0].mxu0 %v180
  %v509 = vpop.f32.mrb[0].mxu0
  %v510 = vadd.f32 %v335, %v509
  %v511 = vpop.f32.mrb[0].mxu0
  %v512 = vpop.f32.mrb[0].mxu0
  %v513 = vadd.f32 %v338, %v512
  %v514 = vpop.f32.mrb[0].mxu0
  %515 = vmatprep.mubr.bf16.mxu0 0
  %516 = vmatmul.mubr.bf16.gmra.mrb[0].mxu0 %v183
  %v517 = vpop.f32.mrb[0].mxu0
  %v518 = vadd.f32 %v343, %v517
  %v519 = vpop.f32.mrb[0].mxu0
  %v520 = vpop.f32.mrb[0].mxu0
  %v521 = vadd.f32 %v346, %v520
  %v522 = vpop.f32.mrb[0].mxu0
  %523 = vdwg.mxu0
  %v524 = vld [vmem:[%s0 + $0x10] sm:$0xf]
  %v525 = vld [vmem:[%s0 + $0x14] sm:$0xf]
  %v526 = vld [vmem:[%s0 + $0x18] sm:$0xf]
  %v527 = vld [vmem:[%s0 + $0x1c] sm:$0xf]
  %v528 = vld [vmem:[%s0 + $0x20] sm:$0xf]
  %v529 = vld [vmem:[%s0 + $0x24] sm:$0xf]
  %v530 = vld [vmem:[%s0 + $0x28] sm:$0xf]
  %v531 = vld [vmem:[%s0 + $0x2c] sm:$0xf]
  %v532 = vld [vmem:[%s0 + $0x30] sm:$0xf]
  %v533 = vld [vmem:[%s0 + $0x34] sm:$0xf]
  %v534 = vld [vmem:[%s0 + $0x38] sm:$0xf]
  %v535 = vld [vmem:[%s0 + $0x3c] sm:$0xf]
  %v536 = vld [vmem:[%s0 + $0x40] sm:$0xf]
  %v537 = vld [vmem:[%s0 + $0x44] sm:$0xf]
  %v538 = vld [vmem:[%s0 + $0x48] sm:$0xf]
  %v539 = vld [vmem:[%s0 + $0x4c] sm:$0xf]
  %v540 = vld [vmem:[%s0 + $0x50] sm:$0xf]
  %v541 = vld [vmem:[%s0 + $0x54] sm:$0xf]
  %v542 = vld [vmem:[%s0 + $0x58] sm:$0xf]
  %v543 = vld [vmem:[%s0 + $0x5c] sm:$0xf]
  %v544 = vld [vmem:[%s0 + $0x60] sm:$0xf]
  %v545 = vld [vmem:[%s0 + $0x64] sm:$0xf]
  %v546 = vld [vmem:[%s0 + $0x68] sm:$0xf]
  %v547 = vld [vmem:[%s0 + $0x6c] sm:$0xf]
  %v548 = vld [vmem:[%s0 + $0x70] sm:$0xf]
  %v549 = vld [vmem:[%s0 + $0x74] sm:$0xf]
  %v550 = vld [vmem:[%s0 + $0x78] sm:$0xf]
  %v551 = vld [vmem:[%s0 + $0x7c] sm:$0xf]
  %v552 = vld [vmem:[%s0 + $0x80] sm:$0xf]
  %v553 = vld [vmem:[%s0 + $0x84] sm:$0xf]
  %v554 = vld [vmem:[%s0 + $0x88] sm:$0xf]
  %v555 = vld [vmem:[%s0 + $0x8c] sm:$0xf]
  %v556 = vld [vmem:[%s2 + $0x10] sm:$0xf]
  %v557 = vld [vmem:[%s2 + $0x14] sm:$0xf]
  %v590 = vunpack.c.l.b16 %v524
  %v591 = vunpack.c.l.b16 %v525
  %v592 = vunpack.c.l.b16 %v526
  %v593 = vunpack.c.l.b16 %v527
  %v594 = vunpack.c.l.b16 %v528
  %v595 = vunpack.c.l.b16 %v529
  %v596 = vunpack.c.l.b16 %v530
  %v597 = vunpack.c.l.b16 %v531
  %v598 = vunpack.c.l.b16 %v532
  %v599 = vunpack.c.l.b16 %v533
  %v600 = vunpack.c.l.b16 %v534
  %v601 = vunpack.c.l.b16 %v535
  %v602 = vunpack.c.l.b16 %v536
  %v603 = vunpack.c.l.b16 %v537
  %v604 = vunpack.c.l.b16 %v538
  %v605 = vunpack.c.l.b16 %v539
  %v606 = vunpack.c.l.b16 %v540
  %v607 = vunpack.c.l.b16 %v541
  %v608 = vunpack.c.l.b16 %v542
  %v609 = vunpack.c.l.b16 %v543
  %v610 = vunpack.c.l.b16 %v544
  %v611 = vunpack.c.l.b16 %v545
  %v612 = vunpack.c.l.b16 %v546
  %v613 = vunpack.c.l.b16 %v547
  %v614 = vunpack.c.l.b16 %v548
  %v615 = vunpack.c.l.b16 %v549
  %v616 = vunpack.c.l.b16 %v550
  %v617 = vunpack.c.l.b16 %v551
  %v618 = vunpack.c.l.b16 %v552
  %v619 = vunpack.c.l.b16 %v553
  %v620 = vunpack.c.l.b16 %v554
  %v621 = vunpack.c.l.b16 %v555
  %v622 = vpack.c.b16 %v591, %v590
  %v623 = vpack.c.b16 %v593, %v592
  %v624 = vpack.c.b16 %v595, %v594
  %v625 = vpack.c.b16 %v597, %v596
  %v626 = vpack.c.b16 %v599, %v598
  %v627 = vpack.c.b16 %v601, %v600
  %v628 = vpack.c.b16 %v603, %v602
  %v629 = vpack.c.b16 %v605, %v604
  %v630 = vpack.c.b16 %v607, %v606
  %v631 = vpack.c.b16 %v609, %v608
  %v632 = vpack.c.b16 %v611, %v610
  %v633 = vpack.c.b16 %v613, %v612
  %v634 = vpack.c.b16 %v615, %v614
  %v635 = vpack.c.b16 %v617, %v616
  %v636 = vpack.c.b16 %v619, %v618
  %v637 = vpack.c.b16 %v621, %v620
  %v640 = vunpack.c.l.b16 %v556
  %v641 = vunpack.c.l.b16 %v557
  %v642 = vpack.c.b16 %v641, %v640
  %v645 = vsel %vm139, %v622, 0
  %v648 = vsel %vm139, %v623, 0
  %v651 = vsel %vm139, %v624, 0
  %v654 = vsel %vm139, %v625, 0
  %v657 = vsel %vm139, %v626, 0
  %v660 = vsel %vm139, %v627, 0
  %v663 = vsel %vm139, %v628, 0
  %v666 = vsel %vm139, %v629, 0
  %v669 = vsel %vm139, %v630, 0
  %v672 = vsel %vm139, %v631, 0
  %v675 = vsel %vm139, %v632, 0
  %v678 = vsel %vm139, %v633, 0
  %v681 = vsel %vm139, %v634, 0
  %v684 = vsel %vm139, %v635, 0
  %v687 = vsel %vm139, %v636, 0
  %v690 = vsel %vm139, %v637, 0
  %692 = vmatprep.subr.bf16.mxu0 0
  %693 = vmatpush1.bf16.msra.mxu0 %v642
  %694 = vmatprep.subr.bf16.mxu0 0
  %695 = vmatpush1.bf16.msra.mxu0 0
  %696 = vmatprep.subr.bf16.mxu0 0
  %697 = vmatpush1.bf16.msra.mxu0 0
  %698 = vmatprep.subr.bf16.mxu0 0
  %699 = vmatpush1.bf16.msra.mxu0 0
  %700 = vmatprep.subr.bf16.mxu0 0
  %701 = vmatpush1.bf16.msra.mxu0 0
  %702 = vmatprep.subr.bf16.mxu0 0
  %703 = vmatpush1.bf16.msra.mxu0 0
  %704 = vmatprep.subr.bf16.mxu0 0
  %705 = vmatpush1.bf16.msra.mxu0 0
  %706 = vmatprep.subr.bf16.mxu0 0
  %707 = vmatpush1.bf16.msra.mxu0 0
  %708 = vmatprep.subr.bf16.mxu0 0
  %709 = vmatpush1.bf16.msra.mxu0 0
  %710 = vmatprep.subr.bf16.mxu0 0
  %711 = vmatpush1.bf16.msra.mxu0 0
  %712 = vmatprep.subr.bf16.mxu0 0
  %713 = vmatpush1.bf16.msra.mxu0 0
  %714 = vmatprep.subr.bf16.mxu0 0
  %715 = vmatpush1.bf16.msra.mxu0 0
  %716 = vmatprep.subr.bf16.mxu0 0
  %717 = vmatpush1.bf16.msra.mxu0 0
  %718 = vmatprep.subr.bf16.mxu0 0
  %719 = vmatpush1.bf16.msra.mxu0 0
  %720 = vmatprep.subr.bf16.mxu0 0
  %721 = vmatpush1.bf16.msra.mxu0 0
  %722 = vmatprep.subr.bf16.mxu0 0
  %723 = vmatpush1.bf16.msra.mxu0 0
  %724 = vmatprep.mubr.bf16.mxu0 0
  %725 = vmatmul.mubr.bf16.gmra.mrb[0].mxu0 %v645
  %v726 = vpop.f32.mrb[0].mxu0
  %v727 = vadd.f32 0.0, %v726
  %v728 = vpop.f32.mrb[0].mxu0
  %v729 = vpop.f32.mrb[0].mxu0
  %v730 = vadd.f32 0.0, %v729
  %v731 = vpop.f32.mrb[0].mxu0
  %732 = vmatprep.mubr.bf16.mxu0 0
  %733 = vmatmul.mubr.bf16.gmra.mrb[0].mxu0 %v648
  %v734 = vpop.f32.mrb[0].mxu0
  %v735 = vadd.f32 0.0, %v734
  %v736 = vpop.f32.mrb[0].mxu0
  %v737 = vpop.f32.mrb[0].mxu0
  %v738 = vadd.f32 0.0, %v737
  %v739 = vpop.f32.mrb[0].mxu0
  %740 = vmatprep.mubr.bf16.mxu0 0
  %741 = vmatmul.mubr.bf16.gmra.mrb[0].mxu0 %v651
  %v742 = vpop.f32.mrb[0].mxu0
  %v743 = vadd.f32 0.0, %v742
  %v744 = vpop.f32.mrb[0].mxu0
  %v745 = vpop.f32.mrb[0].mxu0
  %v746 = vadd.f32 0.0, %v745
  %v747 = vpop.f32.mrb[0].mxu0
  %748 = vmatprep.mubr.bf16.mxu0 0
  %749 = vmatmul.mubr.bf16.gmra.mrb[0].mxu0 %v654
  %v750 = vpop.f32.mrb[0].mxu0
  %v751 = vadd.f32 0.0, %v750
  %v752 = vpop.f32.mrb[0].mxu0
  %v753 = vpop.f32.mrb[0].mxu0
  %v754 = vadd.f32 0.0, %v753
  %v755 = vpop.f32.mrb[0].mxu0
  %756 = vmatprep.mubr.bf16.mxu0 0
  %757 = vmatmul.mubr.bf16.gmra.mrb[0].mxu0 %v657
  %v758 = vpop.f32.mrb[0].mxu0
  %v759 = vadd.f32 0.0, %v758
  %v760 = vpop.f32.mrb[0].mxu0
  %v761 = vpop.f32.mrb[0].mxu0
  %v762 = vadd.f32 0.0, %v761
  %v763 = vpop.f32.mrb[0].mxu0
  %764 = vmatprep.mubr.bf16.mxu0 0
  %765 = vmatmul.mubr.bf16.gmra.mrb[0].mxu0 %v660
  %v766 = vpop.f32.mrb[0].mxu0
  %v767 = vadd.f32 0.0, %v766
  %v768 = vpop.f32.mrb[0].mxu0
  %v769 = vpop.f32.mrb[0].mxu0
  %v770 = vadd.f32 0.0, %v769
  %v771 = vpop.f32.mrb[0].mxu0
  %772 = vmatprep.mubr.bf16.mxu0 0
  %773 = vmatmul.mubr.bf16.gmra.mrb[0].mxu0 %v663
  %v774 = vpop.f32.mrb[0].mxu0
  %v775 = vadd.f32 0.0, %v774
  %v776 = vpop.f32.mrb[0].mxu0
  %v777 = vpop.f32.mrb[0].mxu0
  %v778 = vadd.f32 0.0, %v777
  %v779 = vpop.f32.mrb[0].mxu0
  %780 = vmatprep.mubr.bf16.mxu0 0
  %781 = vmatmul.mubr.bf16.gmra.mrb[0].mxu0 %v666
  %v782 = vpop.f32.mrb[0].mxu0
  %v783 = vadd.f32 0.0, %v782
  %v784 = vpop.f32.mrb[0].mxu0
  %v785 = vpop.f32.mrb[0].mxu0
  %v786 = vadd.f32 0.0, %v785
  %v787 = vpop.f32.mrb[0].mxu0
  %788 = vmatprep.mubr.bf16.mxu0 0
  %789 = vmatmul.mubr.bf16.gmra.mrb[0].mxu0 %v669
  %v790 = vpop.f32.mrb[0].mxu0
  %v791 = vadd.f32 0.0, %v790
  %v792 = vpop.f32.mrb[0].mxu0
  %v793 = vpop.f32.mrb[0].mxu0
  %v794 = vadd.f32 0.0, %v793
  %v795 = vpop.f32.mrb[0].mxu0
  %796 = vmatprep.mubr.bf16.mxu0 0
  %797 = vmatmul.mubr.bf16.gmra.mrb[0].mxu0 %v672
  %v798 = vpop.f32.mrb[0].mxu0
  %v799 = vadd.f32 0.0, %v798
  %v800 = vpop.f32.mrb[0].mxu0
  %v801 = vpop.f32.mrb[0].mxu0
  %v802 = vadd.f32 0.0, %v801
  %v803 = vpop.f32.mrb[0].mxu0
  %804 = vmatprep.mubr.bf16.mxu0 0
  %805 = vmatmul.mubr.bf16.gmra.mrb[0].mxu0 %v675
  %v806 = vpop.f32.mrb[0].mxu0
  %v807 = vadd.f32 0.0, %v806
  %v808 = vpop.f32.mrb[0].mxu0
  %v809 = vpop.f32.mrb[0].mxu0
  %v810 = vadd.f32 0.0, %v809
  %v811 = vpop.f32.mrb[0].mxu0
  %812 = vmatprep.mubr.bf16.mxu0 0
  %813 = vmatmul.mubr.bf16.gmra.mrb[0].mxu0 %v678
  %v814 = vpop.f32.mrb[0].mxu0
  %v815 = vadd.f32 0.0, %v814
  %v816 = vpop.f32.mrb[0].mxu0
  %v817 = vpop.f32.mrb[0].mxu0
  %v818 = vadd.f32 0.0, %v817
  %v819 = vpop.f32.mrb[0].mxu0
  %820 = vmatprep.mubr.bf16.mxu0 0
  %821 = vmatmul.mubr.bf16.gmra.mrb[0].mxu0 %v681
  %v822 = vpop.f32.mrb[0].mxu0
  %v823 = vadd.f32 0.0, %v822
  %v824 = vpop.f32.mrb[0].mxu0
  %v825 = vpop.f32.mrb[0].mxu0
  %v826 = vadd.f32 0.0, %v825
  %v827 = vpop.f32.mrb[0].mxu0
  %828 = vmatprep.mubr.bf16.mxu0 0
  %829 = vmatmul.mubr.bf16.gmra.mrb[0].mxu0 %v684
  %v830 = vpop.f32.mrb[0].mxu0
  %v831 = vadd.f32 0.0, %v830
  %v832 = vpop.f32.mrb[0].mxu0
  %v833 = vpop.f32.mrb[0].mxu0
  %v834 = vadd.f32 0.0, %v833
  %v835 = vpop.f32.mrb[0].mxu0
  %836 = vmatprep.mubr.bf16.mxu0 0
  %837 = vmatmul.mubr.bf16.gmra.mrb[0].mxu0 %v687
  %v838 = vpop.f32.mrb[0].mxu0
  %v839 = vadd.f32 0.0, %v838
  %v840 = vpop.f32.mrb[0].mxu0
  %v841 = vpop.f32.mrb[0].mxu0
  %v842 = vadd.f32 0.0, %v841
  %v843 = vpop.f32.mrb[0].mxu0
  %844 = vmatprep.mubr.bf16.mxu0 0
  %845 = vmatmul.mubr.bf16.gmra.mrb[0].mxu0 %v690
  %v846 = vpop.f32.mrb[0].mxu0
  %v847 = vadd.f32 0.0, %v846
  %v848 = vpop.f32.mrb[0].mxu0
  %v849 = vpop.f32.mrb[0].mxu0
  %v850 = vadd.f32 0.0, %v849
  %v851 = vpop.f32.mrb[0].mxu0
  %852 = vdwg.mxu0
  %v853 = vadd.f32 %v398, %v727
  %v854 = vadd.f32 %v401, %v730
  %v855 = vadd.f32 %v406, %v735
  %v856 = vadd.f32 %v409, %v738
  %v857 = vadd.f32 %v414, %v743
  %v858 = vadd.f32 %v417, %v746
  %v859 = vadd.f32 %v422, %v751
  %v860 = vadd.f32 %v425, %v754
  %v861 = vadd.f32 %v430, %v759
  %v862 = vadd.f32 %v433, %v762
  %v863 = vadd.f32 %v438, %v767
  %v864 = vadd.f32 %v441, %v770
  %v865 = vadd.f32 %v446, %v775
  %v866 = vadd.f32 %v449, %v778
  %v867 = vadd.f32 %v454, %v783
  %v868 = vadd.f32 %v457, %v786
  %v869 = vadd.f32 %v462, %v791
  %v870 = vadd.f32 %v465, %v794
  %v871 = vadd.f32 %v470, %v799
  %v872 = vadd.f32 %v473, %v802
  %v873 = vadd.f32 %v478, %v807
  %v874 = vadd.f32 %v481, %v810
  %v875 = vadd.f32 %v486, %v815
  %v876 = vadd.f32 %v489, %v818
  %v877 = vadd.f32 %v494, %v823
  %v878 = vadd.f32 %v497, %v826
  %v879 = vadd.f32 %v502, %v831
  %v880 = vadd.f32 %v505, %v834
  %v881 = vadd.f32 %v510, %v839
  %v882 = vadd.f32 %v513, %v842
  %v883 = vadd.f32 %v518, %v847
  %v884 = vadd.f32 %v521, %v850
  %v885 = vld [vmem:[%s0 + $0x90] sm:$0xf]
  %v886 = vld [vmem:[%s0 + $0x94] sm:$0xf]
  %v887 = vld [vmem:[%s0 + $0x98] sm:$0xf]
  %v888 = vld [vmem:[%s0 + $0x9c] sm:$0xf]
  %v889 = vld [vmem:[%s0 + $0xa0] sm:$0xf]
  %v890 = vld [vmem:[%s0 + $0xa4] sm:$0xf]
  %v891 = vld [vmem:[%s0 + $0xa8] sm:$0xf]
  %v892 = vld [vmem:[%s0 + $0xac] sm:$0xf]
  %v893 = vld [vmem:[%s0 + $0xb0] sm:$0xf]
  %v894 = vld [vmem:[%s0 + $0xb4] sm:$0xf]
  %v895 = vld [vmem:[%s0 + $0xb8] sm:$0xf]
  %v896 = vld [vmem:[%s0 + $0xbc] sm:$0xf]
  %v897 = vld [vmem:[%s0 + $0xc0] sm:$0xf]
  %v898 = vld [vmem:[%s0 + $0xc4] sm:$0xf]
  %v899 = vld [vmem:[%s0 + $0xc8] sm:$0xf]
  %v900 = vld [vmem:[%s0 + $0xcc] sm:$0xf]
  %v901 = vld [vmem:[%s0 + $0xd0] sm:$0xf]
  %v902 = vld [vmem:[%s0 + $0xd4] sm:$0xf]
  %v903 = vld [vmem:[%s0 + $0xd8] sm:$0xf]
  %v904 = vld [vmem:[%s0 + $0xdc] sm:$0xf]
  %v905 = vld [vmem:[%s0 + $0xe0] sm:$0xf]
  %v906 = vld [vmem:[%s0 + $0xe4] sm:$0xf]
  %v907 = vld [vmem:[%s0 + $0xe8] sm:$0xf]
  %v908 = vld [vmem:[%s0 + $0xec] sm:$0xf]
  %v909 = vld [vmem:[%s0 + $0xf0] sm:$0xf]
  %v910 = vld [vmem:[%s0 + $0xf4] sm:$0xf]
  %v911 = vld [vmem:[%s0 + $0xf8] sm:$0xf]
  %v912 = vld [vmem:[%s0 + $0xfc] sm:$0xf]
  %v913 = vld [vmem:[%s0 + $0x100] sm:$0xf]
  %v914 = vld [vmem:[%s0 + $0x104] sm:$0xf]
  %v915 = vld [vmem:[%s0 + $0x108] sm:$0xf]
  %v916 = vld [vmem:[%s0 + $0x10c] sm:$0xf]
  %v917 = vld [vmem:[%s0 + $0x110] sm:$0xf]
  %v918 = vld [vmem:[%s0 + $0x114] sm:$0xf]
  %v951 = vunpack.c.l.b16 %v887
  %v952 = vunpack.c.l.b16 %v888
  %v953 = vunpack.c.l.b16 %v889
  %v954 = vunpack.c.l.b16 %v890
  %v955 = vunpack.c.l.b16 %v891
  %v956 = vunpack.c.l.b16 %v892
  %v957 = vunpack.c.l.b16 %v893
  %v958 = vunpack.c.l.b16 %v894
  %v959 = vunpack.c.l.b16 %v895
  %v960 = vunpack.c.l.b16 %v896
  %v961 = vunpack.c.l.b16 %v897
  %v962 = vunpack.c.l.b16 %v898
  %v963 = vunpack.c.l.b16 %v899
  %v964 = vunpack.c.l.b16 %v900
  %v965 = vunpack.c.l.b16 %v901
  %v966 = vunpack.c.l.b16 %v902
  %v967 = vunpack.c.l.b16 %v903
  %v968 = vunpack.c.l.b16 %v904
  %v969 = vunpack.c.l.b16 %v905
  %v970 = vunpack.c.l.b16 %v906
  %v971 = vunpack.c.l.b16 %v907
  %v972 = vunpack.c.l.b16 %v908
  %v973 = vunpack.c.l.b16 %v909
  %v974 = vunpack.c.l.b16 %v910
  %v975 = vunpack.c.l.b16 %v911
  %v976 = vunpack.c.l.b16 %v912
  %v977 = vunpack.c.l.b16 %v913
  %v978 = vunpack.c.l.b16 %v914
  %v979 = vunpack.c.l.b16 %v915
  %v980 = vunpack.c.l.b16 %v916
  %v981 = vunpack.c.l.b16 %v917
  %v982 = vunpack.c.l.b16 %v918
  %v983 = vpack.c.b16 %v952, %v951
  %v984 = vpack.c.b16 %v954, %v953
  %v985 = vpack.c.b16 %v956, %v955
  %v986 = vpack.c.b16 %v958, %v957
  %v987 = vpack.c.b16 %v960, %v959
  %v988 = vpack.c.b16 %v962, %v961
  %v989 = vpack.c.b16 %v964, %v963
  %v990 = vpack.c.b16 %v966, %v965
  %v991 = vpack.c.b16 %v968, %v967
  %v992 = vpack.c.b16 %v970, %v969
  %v993 = vpack.c.b16 %v972, %v971
  %v994 = vpack.c.b16 %v974, %v973
  %v995 = vpack.c.b16 %v976, %v975
  %v996 = vpack.c.b16 %v978, %v977
  %v997 = vpack.c.b16 %v980, %v979
  %v998 = vpack.c.b16 %v982, %v981
  %v1000 = vsel %vm139, %v983, 0
  %v1003 = vsel %vm139, %v984, 0
  %v1006 = vsel %vm139, %v985, 0
  %v1009 = vsel %vm139, %v986, 0
  %v1012 = vsel %vm139, %v987, 0
  %v1015 = vsel %vm139, %v988, 0
  %v1018 = vsel %vm139, %v989, 0
  %v1021 = vsel %vm139, %v990, 0
  %v1024 = vsel %vm139, %v991, 0
  %v1027 = vsel %vm139, %v992, 0
  %v1030 = vsel %vm139, %v993, 0
  %v1033 = vsel %vm139, %v994, 0
  %v1036 = vsel %vm139, %v995, 0
  %v1039 = vsel %vm139, %v996, 0
  %v1042 = vsel %vm139, %v997, 0
  %v1045 = vsel %vm139, %v998, 0
  %1047 = vmatprep.subr.bf16.mxu0 0
  %1048 = vmatpush1.bf16.msra.mxu0 %v137
  %1049 = vmatprep.subr.bf16.mxu0 0
  %1050 = vmatpush1.bf16.msra.mxu0 0
  %1051 = vmatprep.subr.bf16.mxu0 0
  %1052 = vmatpush1.bf16.msra.mxu0 0
  %1053 = vmatprep.subr.bf16.mxu0 0
  %1054 = vmatpush1.bf16.msra.mxu0 0
  %1055 = vmatprep.subr.bf16.mxu0 0
  %1056 = vmatpush1.bf16.msra.mxu0 0
  %1057 = vmatprep.subr.bf16.mxu0 0
  %1058 = vmatpush1.bf16.msra.mxu0 0
  %1059 = vmatprep.subr.bf16.mxu0 0
  %1060 = vmatpush1.bf16.msra.mxu0 0
  %1061 = vmatprep.subr.bf16.mxu0 0
  %1062 = vmatpush1.bf16.msra.mxu0 0
  %1063 = vmatprep.subr.bf16.mxu0 0
  %1064 = vmatpush1.bf16.msra.mxu0 0
  %1065 = vmatprep.subr.bf16.mxu0 0
  %1066 = vmatpush1.bf16.msra.mxu0 0
  %1067 = vmatprep.subr.bf16.mxu0 0
  %1068 = vmatpush1.bf16.msra.mxu0 0
  %1069 = vmatprep.subr.bf16.mxu0 0
  %1070 = vmatpush1.bf16.msra.mxu0 0
  %1071 = vmatprep.subr.bf16.mxu0 0
  %1072 = vmatpush1.bf16.msra.mxu0 0
  %1073 = vmatprep.subr.bf16.mxu0 0
  %1074 = vmatpush1.bf16.msra.mxu0 0
  %1075 = vmatprep.subr.bf16.mxu0 0
  %1076 = vmatpush1.bf16.msra.mxu0 0
  %1077 = vmatprep.subr.bf16.mxu0 0
  %1078 = vmatpush1.bf16.msra.mxu0 0
  %1079 = vmatprep.mubr.bf16.mxu0 0
  %1080 = vmatmul.mubr.bf16.gmra.mrb[0].mxu0 %v1000
  %v1081 = vpop.f32.mrb[0].mxu0
  %v1082 = vadd.f32 0.0, %v1081
  %v1083 = vpop.f32.mrb[0].mxu0
  %v1084 = vpop.f32.mrb[0].mxu0
  %v1085 = vadd.f32 0.0, %v1084
  %v1086 = vpop.f32.mrb[0].mxu0
  %1087 = vmatprep.mubr.bf16.mxu0 0
  %1088 = vmatmul.mubr.bf16.gmra.mrb[0].mxu0 %v1003
  %v1089 = vpop.f32.mrb[0].mxu0
  %v1090 = vadd.f32 0.0, %v1089
  %v1091 = vpop.f32.mrb[0].mxu0
  %v1092 = vpop.f32.mrb[0].mxu0
  %v1093 = vadd.f32 0.0, %v1092
  %v1094 = vpop.f32.mrb[0].mxu0
  %1095 = vmatprep.mubr.bf16.mxu0 0
  %1096 = vmatmul.mubr.bf16.gmra.mrb[0].mxu0 %v1006
  %v1097 = vpop.f32.mrb[0].mxu0
  %v1098 = vadd.f32 0.0, %v1097
  %v1099 = vpop.f32.mrb[0].mxu0
  %v1100 = vpop.f32.mrb[0].mxu0
  %v1101 = vadd.f32 0.0, %v1100
  %v1102 = vpop.f32.mrb[0].mxu0
  %1103 = vmatprep.mubr.bf16.mxu0 0
  %1104 = vmatmul.mubr.bf16.gmra.mrb[0].mxu0 %v1009
  %v1105 = vpop.f32.mrb[0].mxu0
  %v1106 = vadd.f32 0.0, %v1105
  %v1107 = vpop.f32.mrb[0].mxu0
  %v1108 = vpop.f32.mrb[0].mxu0
  %v1109 = vadd.f32 0.0, %v1108
  %v1110 = vpop.f32.mrb[0].mxu0
  %1111 = vmatprep.mubr.bf16.mxu0 0
  %1112 = vmatmul.mubr.bf16.gmra.mrb[0].mxu0 %v1012
  %v1113 = vpop.f32.mrb[0].mxu0
  %v1114 = vadd.f32 0.0, %v1113
  %v1115 = vpop.f32.mrb[0].mxu0
  %v1116 = vpop.f32.mrb[0].mxu0
  %v1117 = vadd.f32 0.0, %v1116
  %v1118 = vpop.f32.mrb[0].mxu0
  %1119 = vmatprep.mubr.bf16.mxu0 0
  %1120 = vmatmul.mubr.bf16.gmra.mrb[0].mxu0 %v1015
  %v1121 = vpop.f32.mrb[0].mxu0
  %v1122 = vadd.f32 0.0, %v1121
  %v1123 = vpop.f32.mrb[0].mxu0
  %v1124 = vpop.f32.mrb[0].mxu0
  %v1125 = vadd.f32 0.0, %v1124
  %v1126 = vpop.f32.mrb[0].mxu0
  %1127 = vmatprep.mubr.bf16.mxu0 0
  %1128 = vmatmul.mubr.bf16.gmra.mrb[0].mxu0 %v1018
  %v1129 = vpop.f32.mrb[0].mxu0
  %v1130 = vadd.f32 0.0, %v1129
  %v1131 = vpop.f32.mrb[0].mxu0
  %v1132 = vpop.f32.mrb[0].mxu0
  %v1133 = vadd.f32 0.0, %v1132
  %v1134 = vpop.f32.mrb[0].mxu0
  %1135 = vmatprep.mubr.bf16.mxu0 0
  %1136 = vmatmul.mubr.bf16.gmra.mrb[0].mxu0 %v1021
  %v1137 = vpop.f32.mrb[0].mxu0
  %v1138 = vadd.f32 0.0, %v1137
  %v1139 = vpop.f32.mrb[0].mxu0
  %v1140 = vpop.f32.mrb[0].mxu0
  %v1141 = vadd.f32 0.0, %v1140
  %v1142 = vpop.f32.mrb[0].mxu0
  %1143 = vmatprep.mubr.bf16.mxu0 0
  %1144 = vmatmul.mubr.bf16.gmra.mrb[0].mxu0 %v1024
  %v1145 = vpop.f32.mrb[0].mxu0
  %v1146 = vadd.f32 0.0, %v1145
  %v1147 = vpop.f32.mrb[0].mxu0
  %v1148 = vpop.f32.mrb[0].mxu0
  %v1149 = vadd.f32 0.0, %v1148
  %v1150 = vpop.f32.mrb[0].mxu0
  %1151 = vmatprep.mubr.bf16.mxu0 0
  %1152 = vmatmul.mubr.bf16.gmra.mrb[0].mxu0 %v1027
  %v1153 = vpop.f32.mrb[0].mxu0
  %v1154 = vadd.f32 0.0, %v1153
  %v1155 = vpop.f32.mrb[0].mxu0
  %v1156 = vpop.f32.mrb[0].mxu0
  %v1157 = vadd.f32 0.0, %v1156
  %v1158 = vpop.f32.mrb[0].mxu0
  %1159 = vmatprep.mubr.bf16.mxu0 0
  %1160 = vmatmul.mubr.bf16.gmra.mrb[0].mxu0 %v1030
  %v1161 = vpop.f32.mrb[0].mxu0
  %v1162 = vadd.f32 0.0, %v1161
  %v1163 = vpop.f32.mrb[0].mxu0
  %v1164 = vpop.f32.mrb[0].mxu0
  %v1165 = vadd.f32 0.0, %v1164
  %v1166 = vpop.f32.mrb[0].mxu0
  %1167 = vmatprep.mubr.bf16.mxu0 0
  %1168 = vmatmul.mubr.bf16.gmra.mrb[0].mxu0 %v1033
  %v1169 = vpop.f32.mrb[0].mxu0
  %v1170 = vadd.f32 0.0, %v1169
  %v1171 = vpop.f32.mrb[0].mxu0
  %v1172 = vpop.f32.mrb[0].mxu0
  %v1173 = vadd.f32 0.0, %v1172
  %v1174 = vpop.f32.mrb[0].mxu0
  %1175 = vmatprep.mubr.bf16.mxu0 0
  %1176 = vmatmul.mubr.bf16.gmra.mrb[0].mxu0 %v1036
  %v1177 = vpop.f32.mrb[0].mxu0
  %v1178 = vadd.f32 0.0, %v1177
  %v1179 = vpop.f32.mrb[0].mxu0
  %v1180 = vpop.f32.mrb[0].mxu0
  %v1181 = vadd.f32 0.0, %v1180
  %v1182 = vpop.f32.mrb[0].mxu0
  %1183 = vmatprep.mubr.bf16.mxu0 0
  %1184 = vmatmul.mubr.bf16.gmra.mrb[0].mxu0 %v1039
  %v1185 = vpop.f32.mrb[0].mxu0
  %v1186 = vadd.f32 0.0, %v1185
  %v1187 = vpop.f32.mrb[0].mxu0
  %v1188 = vpop.f32.mrb[0].mxu0
  %v1189 = vadd.f32 0.0, %v1188
  %v1190 = vpop.f32.mrb[0].mxu0
  %1191 = vmatprep.mubr.bf16.mxu0 0
  %1192 = vmatmul.mubr.bf16.gmra.mrb[0].mxu0 %v1042
  %v1193 = vpop.f32.mrb[0].mxu0
  %v1194 = vadd.f32 0.0, %v1193
  %v1195 = vpop.f32.mrb[0].mxu0
  %v1196 = vpop.f32.mrb[0].mxu0
  %v1197 = vadd.f32 0.0, %v1196
  %v1198 = vpop.f32.mrb[0].mxu0
  %1199 = vmatprep.mubr.bf16.mxu0 0
  %1200 = vmatmul.mubr.bf16.gmra.mrb[0].mxu0 %v1045
  %v1201 = vpop.f32.mrb[0].mxu0
  %v1202 = vadd.f32 0.0, %v1201
  %v1203 = vpop.f32.mrb[0].mxu0
  %v1204 = vpop.f32.mrb[0].mxu0
  %v1205 = vadd.f32 0.0, %v1204
  %v1206 = vpop.f32.mrb[0].mxu0
  %1207 = vdwg.mxu0
  %v1210 = vunpack.c.l.b16 %v885
  %v1211 = vunpack.c.l.b16 %v886
  %v1212 = vpack.c.b16 %v1211, %v1210
  %v1214 = vsel %vm139, %v1212, 0
  %1216 = vmatprep.subr.bf16.mxu0 0
  %1217 = vmatpush1.bf16.msra.mxu0 %v358
  %1218 = vmatprep.subr.bf16.mxu0 0
  %1219 = vmatpush1.bf16.msra.mxu0 0
  %1220 = vmatprep.subr.bf16.mxu0 0
  %1221 = vmatpush1.bf16.msra.mxu0 0
  %1222 = vmatprep.subr.bf16.mxu0 0
  %1223 = vmatpush1.bf16.msra.mxu0 0
  %1224 = vmatprep.subr.bf16.mxu0 0
  %1225 = vmatpush1.bf16.msra.mxu0 0
  %1226 = vmatprep.subr.bf16.mxu0 0
  %1227 = vmatpush1.bf16.msra.mxu0 0
  %1228 = vmatprep.subr.bf16.mxu0 0
  %1229 = vmatpush1.bf16.msra.mxu0 0
  %1230 = vmatprep.subr.bf16.mxu0 0
  %1231 = vmatpush1.bf16.msra.mxu0 0
  %1232 = vmatprep.subr.bf16.mxu0 0
  %1233 = vmatpush1.bf16.msra.mxu0 0
  %1234 = vmatprep.subr.bf16.mxu0 0
  %1235 = vmatpush1.bf16.msra.mxu0 0
  %1236 = vmatprep.subr.bf16.mxu0 0
  %1237 = vmatpush1.bf16.msra.mxu0 0
  %1238 = vmatprep.subr.bf16.mxu0 0
  %1239 = vmatpush1.bf16.msra.mxu0 0
  %1240 = vmatprep.subr.bf16.mxu0 0
  %1241 = vmatpush1.bf16.msra.mxu0 0
  %1242 = vmatprep.subr.bf16.mxu0 0
  %1243 = vmatpush1.bf16.msra.mxu0 0
  %1244 = vmatprep.subr.bf16.mxu0 0
  %1245 = vmatpush1.bf16.msra.mxu0 0
  %1246 = vmatprep.subr.bf16.mxu0 0
  %1247 = vmatpush1.bf16.msra.mxu0 0
  %1248 = vmatprep.mubr.bf16.mxu0 0
  %1249 = vmatmul.mubr.bf16.gmra.mrb[0].mxu0 %v1214
  %v1250 = vpop.f32.mrb[0].mxu0
  %v1251 = vadd.f32 %v1082, %v1250
  %v1252 = vpop.f32.mrb[0].mxu0
  %v1253 = vpop.f32.mrb[0].mxu0
  %v1254 = vadd.f32 %v1085, %v1253
  %v1255 = vpop.f32.mrb[0].mxu0
  %1256 = vmatprep.mubr.bf16.mxu0 0
  %1257 = vmatmul.mubr.bf16.gmra.mrb[0].mxu0 %v1000
  %v1258 = vpop.f32.mrb[0].mxu0
  %v1259 = vadd.f32 %v1090, %v1258
  %v1260 = vpop.f32.mrb[0].mxu0
  %v1261 = vpop.f32.mrb[0].mxu0
  %v1262 = vadd.f32 %v1093, %v1261
  %v1263 = vpop.f32.mrb[0].mxu0
  %1264 = vmatprep.mubr.bf16.mxu0 0
  %1265 = vmatmul.mubr.bf16.gmra.mrb[0].mxu0 %v1003
  %v1266 = vpop.f32.mrb[0].mxu0
  %v1267 = vadd.f32 %v1098, %v1266
  %v1268 = vpop.f32.mrb[0].mxu0
  %v1269 = vpop.f32.mrb[0].mxu0
  %v1270 = vadd.f32 %v1101, %v1269
  %v1271 = vpop.f32.mrb[0].mxu0
  %1272 = vmatprep.mubr.bf16.mxu0 0
  %1273 = vmatmul.mubr.bf16.gmra.mrb[0].mxu0 %v1006
  %v1274 = vpop.f32.mrb[0].mxu0
  %v1275 = vadd.f32 %v1106, %v1274
  %v1276 = vpop.f32.mrb[0].mxu0
  %v1277 = vpop.f32.mrb[0].mxu0
  %v1278 = vadd.f32 %v1109, %v1277
  %v1279 = vpop.f32.mrb[0].mxu0
  %1280 = vmatprep.mubr.bf16.mxu0 0
  %1281 = vmatmul.mubr.bf16.gmra.mrb[0].mxu0 %v1009
  %v1282 = vpop.f32.mrb[0].mxu0
  %v1283 = vadd.f32 %v1114, %v1282
  %v1284 = vpop.f32.mrb[0].mxu0
  %v1285 = vpop.f32.mrb[0].mxu0
  %v1286 = vadd.f32 %v1117, %v1285
  %v1287 = vpop.f32.mrb[0].mxu0
  %1288 = vmatprep.mubr.bf16.mxu0 0
  %1289 = vmatmul.mubr.bf16.gmra.mrb[0].mxu0 %v1012
  %v1290 = vpop.f32.mrb[0].mxu0
  %v1291 = vadd.f32 %v1122, %v1290
  %v1292 = vpop.f32.mrb[0].mxu0
  %v1293 = vpop.f32.mrb[0].mxu0
  %v1294 = vadd.f32 %v1125, %v1293
  %v1295 = vpop.f32.mrb[0].mxu0
  %1296 = vmatprep.mubr.bf16.mxu0 0
  %1297 = vmatmul.mubr.bf16.gmra.mrb[0].mxu0 %v1015
  %v1298 = vpop.f32.mrb[0].mxu0
  %v1299 = vadd.f32 %v1130, %v1298
  %v1300 = vpop.f32.mrb[0].mxu0
  %v1301 = vpop.f32.mrb[0].mxu0
  %v1302 = vadd.f32 %v1133, %v1301
  %v1303 = vpop.f32.mrb[0].mxu0
  %1304 = vmatprep.mubr.bf16.mxu0 0
  %1305 = vmatmul.mubr.bf16.gmra.mrb[0].mxu0 %v1018
  %v1306 = vpop.f32.mrb[0].mxu0
  %v1307 = vadd.f32 %v1138, %v1306
  %v1308 = vpop.f32.mrb[0].mxu0
  %v1309 = vpop.f32.mrb[0].mxu0
  %v1310 = vadd.f32 %v1141, %v1309
  %v1311 = vpop.f32.mrb[0].mxu0
  %1312 = vmatprep.mubr.bf16.mxu0 0
  %1313 = vmatmul.mubr.bf16.gmra.mrb[0].mxu0 %v1021
  %v1314 = vpop.f32.mrb[0].mxu0
  %v1315 = vadd.f32 %v1146, %v1314
  %v1316 = vpop.f32.mrb[0].mxu0
  %v1317 = vpop.f32.mrb[0].mxu0
  %v1318 = vadd.f32 %v1149, %v1317
  %v1319 = vpop.f32.mrb[0].mxu0
  %1320 = vmatprep.mubr.bf16.mxu0 0
  %1321 = vmatmul.mubr.bf16.gmra.mrb[0].mxu0 %v1024
  %v1322 = vpop.f32.mrb[0].mxu0
  %v1323 = vadd.f32 %v1154, %v1322
  %v1324 = vpop.f32.mrb[0].mxu0
  %v1325 = vpop.f32.mrb[0].mxu0
  %v1326 = vadd.f32 %v1157, %v1325
  %v1327 = vpop.f32.mrb[0].mxu0
  %1328 = vmatprep.mubr.bf16.mxu0 0
  %1329 = vmatmul.mubr.bf16.gmra.mrb[0].mxu0 %v1027
  %v1330 = vpop.f32.mrb[0].mxu0
  %v1331 = vadd.f32 %v1162, %v1330
  %v1332 = vpop.f32.mrb[0].mxu0
  %v1333 = vpop.f32.mrb[0].mxu0
  %v1334 = vadd.f32 %v1165, %v1333
  %v1335 = vpop.f32.mrb[0].mxu0
  %1336 = vmatprep.mubr.bf16.mxu0 0
  %1337 = vmatmul.mubr.bf16.gmra.mrb[0].mxu0 %v1030
  %v1338 = vpop.f32.mrb[0].mxu0
  %v1339 = vadd.f32 %v1170, %v1338
  %v1340 = vpop.f32.mrb[0].mxu0
  %v1341 = vpop.f32.mrb[0].mxu0
  %v1342 = vadd.f32 %v1173, %v1341
  %v1343 = vpop.f32.mrb[0].mxu0
  %1344 = vmatprep.mubr.bf16.mxu0 0
  %1345 = vmatmul.mubr.bf16.gmra.mrb[0].mxu0 %v1033
  %v1346 = vpop.f32.mrb[0].mxu0
  %v1347 = vadd.f32 %v1178, %v1346
  %v1348 = vpop.f32.mrb[0].mxu0
  %v1349 = vpop.f32.mrb[0].mxu0
  %v1350 = vadd.f32 %v1181, %v1349
  %v1351 = vpop.f32.mrb[0].mxu0
  %1352 = vmatprep.mubr.bf16.mxu0 0
  %1353 = vmatmul.mubr.bf16.gmra.mrb[0].mxu0 %v1036
  %v1354 = vpop.f32.mrb[0].mxu0
  %v1355 = vadd.f32 %v1186, %v1354
  %v1356 = vpop.f32.mrb[0].mxu0
  %v1357 = vpop.f32.mrb[0].mxu0
  %v1358 = vadd.f32 %v1189, %v1357
  %v1359 = vpop.f32.mrb[0].mxu0
  %1360 = vmatprep.mubr.bf16.mxu0 0
  %1361 = vmatmul.mubr.bf16.gmra.mrb[0].mxu0 %v1039
  %v1362 = vpop.f32.mrb[0].mxu0
  %v1363 = vadd.f32 %v1194, %v1362
  %v1364 = vpop.f32.mrb[0].mxu0
  %v1365 = vpop.f32.mrb[0].mxu0
  %v1366 = vadd.f32 %v1197, %v1365
  %v1367 = vpop.f32.mrb[0].mxu0
  %1368 = vmatprep.mubr.bf16.mxu0 0
  %1369 = vmatmul.mubr.bf16.gmra.mrb[0].mxu0 %v1042
  %v1370 = vpop.f32.mrb[0].mxu0
  %v1371 = vadd.f32 %v1202, %v1370
  %v1372 = vpop.f32.mrb[0].mxu0
  %v1373 = vpop.f32.mrb[0].mxu0
  %v1374 = vadd.f32 %v1205, %v1373
  %v1375 = vpop.f32.mrb[0].mxu0
  %1376 = vdwg.mxu0
  %v1377 = vld [vmem:[%s0 + $0xa0] sm:$0xf]
  %v1378 = vld [vmem:[%s0 + $0xa4] sm:$0xf]
  %v1379 = vld [vmem:[%s0 + $0xa8] sm:$0xf]
  %v1380 = vld [vmem:[%s0 + $0xac] sm:$0xf]
  %v1381 = vld [vmem:[%s0 + $0xb0] sm:$0xf]
  %v1382 = vld [vmem:[%s0 + $0xb4] sm:$0xf]
  %v1383 = vld [vmem:[%s0 + $0xb8] sm:$0xf]
  %v1384 = vld [vmem:[%s0 + $0xbc] sm:$0xf]
  %v1385 = vld [vmem:[%s0 + $0xc0] sm:$0xf]
  %v1386 = vld [vmem:[%s0 + $0xc4] sm:$0xf]
  %v1387 = vld [vmem:[%s0 + $0xc8] sm:$0xf]
  %v1388 = vld [vmem:[%s0 + $0xcc] sm:$0xf]
  %v1389 = vld [vmem:[%s0 + $0xd0] sm:$0xf]
  %v1390 = vld [vmem:[%s0 + $0xd4] sm:$0xf]
  %v1391 = vld [vmem:[%s0 + $0xd8] sm:$0xf]
  %v1392 = vld [vmem:[%s0 + $0xdc] sm:$0xf]
  %v1393 = vld [vmem:[%s0 + $0xe0] sm:$0xf]
  %v1394 = vld [vmem:[%s0 + $0xe4] sm:$0xf]
  %v1395 = vld [vmem:[%s0 + $0xe8] sm:$0xf]
  %v1396 = vld [vmem:[%s0 + $0xec] sm:$0xf]
  %v1397 = vld [vmem:[%s0 + $0xf0] sm:$0xf]
  %v1398 = vld [vmem:[%s0 + $0xf4] sm:$0xf]
  %v1399 = vld [vmem:[%s0 + $0xf8] sm:$0xf]
  %v1400 = vld [vmem:[%s0 + $0xfc] sm:$0xf]
  %v1401 = vld [vmem:[%s0 + $0x100] sm:$0xf]
  %v1402 = vld [vmem:[%s0 + $0x104] sm:$0xf]
  %v1403 = vld [vmem:[%s0 + $0x108] sm:$0xf]
  %v1404 = vld [vmem:[%s0 + $0x10c] sm:$0xf]
  %v1405 = vld [vmem:[%s0 + $0x110] sm:$0xf]
  %v1406 = vld [vmem:[%s0 + $0x114] sm:$0xf]
  %v1407 = vld [vmem:[%s0 + $0x118] sm:$0xf]
  %v1408 = vld [vmem:[%s0 + $0x11c] sm:$0xf]
  %v1441 = vunpack.c.l.b16 %v1377
  %v1442 = vunpack.c.l.b16 %v1378
  %v1443 = vunpack.c.l.b16 %v1379
  %v1444 = vunpack.c.l.b16 %v1380
  %v1445 = vunpack.c.l.b16 %v1381
  %v1446 = vunpack.c.l.b16 %v1382
  %v1447 = vunpack.c.l.b16 %v1383
  %v1448 = vunpack.c.l.b16 %v1384
  %v1449 = vunpack.c.l.b16 %v1385
  %v1450 = vunpack.c.l.b16 %v1386
  %v1451 = vunpack.c.l.b16 %v1387
  %v1452 = vunpack.c.l.b16 %v1388
  %v1453 = vunpack.c.l.b16 %v1389
  %v1454 = vunpack.c.l.b16 %v1390
  %v1455 = vunpack.c.l.b16 %v1391
  %v1456 = vunpack.c.l.b16 %v1392
  %v1457 = vunpack.c.l.b16 %v1393
  %v1458 = vunpack.c.l.b16 %v1394
  %v1459 = vunpack.c.l.b16 %v1395
  %v1460 = vunpack.c.l.b16 %v1396
  %v1461 = vunpack.c.l.b16 %v1397
  %v1462 = vunpack.c.l.b16 %v1398
  %v1463 = vunpack.c.l.b16 %v1399
  %v1464 = vunpack.c.l.b16 %v1400
  %v1465 = vunpack.c.l.b16 %v1401
  %v1466 = vunpack.c.l.b16 %v1402
  %v1467 = vunpack.c.l.b16 %v1403
  %v1468 = vunpack.c.l.b16 %v1404
  %v1469 = vunpack.c.l.b16 %v1405
  %v1470 = vunpack.c.l.b16 %v1406
  %v1471 = vunpack.c.l.b16 %v1407
  %v1472 = vunpack.c.l.b16 %v1408
  %v1473 = vpack.c.b16 %v1442, %v1441
  %v1474 = vpack.c.b16 %v1444, %v1443
  %v1475 = vpack.c.b16 %v1446, %v1445
  %v1476 = vpack.c.b16 %v1448, %v1447
  %v1477 = vpack.c.b16 %v1450, %v1449
  %v1478 = vpack.c.b16 %v1452, %v1451
  %v1479 = vpack.c.b16 %v1454, %v1453
  %v1480 = vpack.c.b16 %v1456, %v1455
  %v1481 = vpack.c.b16 %v1458, %v1457
  %v1482 = vpack.c.b16 %v1460, %v1459
  %v1483 = vpack.c.b16 %v1462, %v1461
  %v1484 = vpack.c.b16 %v1464, %v1463
  %v1485 = vpack.c.b16 %v1466, %v1465
  %v1486 = vpack.c.b16 %v1468, %v1467
  %v1487 = vpack.c.b16 %v1470, %v1469
  %v1488 = vpack.c.b16 %v1472, %v1471
  %v1490 = vsel %vm139, %v1473, 0
  %v1493 = vsel %vm139, %v1474, 0
  %v1496 = vsel %vm139, %v1475, 0
  %v1499 = vsel %vm139, %v1476, 0
  %v1502 = vsel %vm139, %v1477, 0
  %v1505 = vsel %vm139, %v1478, 0
  %v1508 = vsel %vm139, %v1479, 0
  %v1511 = vsel %vm139, %v1480, 0
  %v1514 = vsel %vm139, %v1481, 0
  %v1517 = vsel %vm139, %v1482, 0
  %v1520 = vsel %vm139, %v1483, 0
  %v1523 = vsel %vm139, %v1484, 0
  %v1526 = vsel %vm139, %v1485, 0
  %v1529 = vsel %vm139, %v1486, 0
  %v1532 = vsel %vm139, %v1487, 0
  %v1535 = vsel %vm139, %v1488, 0
  %1537 = vmatprep.subr.bf16.mxu0 0
  %1538 = vmatpush1.bf16.msra.mxu0 %v642
  %1539 = vmatprep.subr.bf16.mxu0 0
  %1540 = vmatpush1.bf16.msra.mxu0 0
  %1541 = vmatprep.subr.bf16.mxu0 0
  %1542 = vmatpush1.bf16.msra.mxu0 0
  %1543 = vmatprep.subr.bf16.mxu0 0
  %1544 = vmatpush1.bf16.msra.mxu0 0
  %1545 = vmatprep.subr.bf16.mxu0 0
  %1546 = vmatpush1.bf16.msra.mxu0 0
  %1547 = vmatprep.subr.bf16.mxu0 0
  %1548 = vmatpush1.bf16.msra.mxu0 0
  %1549 = vmatprep.subr.bf16.mxu0 0
  %1550 = vmatpush1.bf16.msra.mxu0 0
  %1551 = vmatprep.subr.bf16.mxu0 0
  %1552 = vmatpush1.bf16.msra.mxu0 0
  %1553 = vmatprep.subr.bf16.mxu0 0
  %1554 = vmatpush1.bf16.msra.mxu0 0
  %1555 = vmatprep.subr.bf16.mxu0 0
  %1556 = vmatpush1.bf16.msra.mxu0 0
  %1557 = vmatprep.subr.bf16.mxu0 0
  %1558 = vmatpush1.bf16.msra.mxu0 0
  %1559 = vmatprep.subr.bf16.mxu0 0
  %1560 = vmatpush1.bf16.msra.mxu0 0
  %1561 = vmatprep.subr.bf16.mxu0 0
  %1562 = vmatpush1.bf16.msra.mxu0 0
  %1563 = vmatprep.subr.bf16.mxu0 0
  %1564 = vmatpush1.bf16.msra.mxu0 0
  %1565 = vmatprep.subr.bf16.mxu0 0
  %1566 = vmatpush1.bf16.msra.mxu0 0
  %1567 = vmatprep.subr.bf16.mxu0 0
  %1568 = vmatpush1.bf16.msra.mxu0 0
  %1569 = vmatprep.mubr.bf16.mxu0 0
  %1570 = vmatmul.mubr.bf16.gmra.mrb[0].mxu0 %v1490
  %v1571 = vpop.f32.mrb[0].mxu0
  %v1572 = vadd.f32 0.0, %v1571
  %v1573 = vpop.f32.mrb[0].mxu0
  %v1574 = vpop.f32.mrb[0].mxu0
  %v1575 = vadd.f32 0.0, %v1574
  %v1576 = vpop.f32.mrb[0].mxu0
  %1577 = vmatprep.mubr.bf16.mxu0 0
  %1578 = vmatmul.mubr.bf16.gmra.mrb[0].mxu0 %v1493
  %v1579 = vpop.f32.mrb[0].mxu0
  %v1580 = vadd.f32 0.0, %v1579
  %v1581 = vpop.f32.mrb[0].mxu0
  %v1582 = vpop.f32.mrb[0].mxu0
  %v1583 = vadd.f32 0.0, %v1582
  %v1584 = vpop.f32.mrb[0].mxu0
  %1585 = vmatprep.mubr.bf16.mxu0 0
  %1586 = vmatmul.mubr.bf16.gmra.mrb[0].mxu0 %v1496
  %v1587 = vpop.f32.mrb[0].mxu0
  %v1588 = vadd.f32 0.0, %v1587
  %v1589 = vpop.f32.mrb[0].mxu0
  %v1590 = vpop.f32.mrb[0].mxu0
  %v1591 = vadd.f32 0.0, %v1590
  %v1592 = vpop.f32.mrb[0].mxu0
  %1593 = vmatprep.mubr.bf16.mxu0 0
  %1594 = vmatmul.mubr.bf16.gmra.mrb[0].mxu0 %v1499
  %v1595 = vpop.f32.mrb[0].mxu0
  %v1596 = vadd.f32 0.0, %v1595
  %v1597 = vpop.f32.mrb[0].mxu0
  %v1598 = vpop.f32.mrb[0].mxu0
  %v1599 = vadd.f32 0.0, %v1598
  %v1600 = vpop.f32.mrb[0].mxu0
  %1601 = vmatprep.mubr.bf16.mxu0 0
  %1602 = vmatmul.mubr.bf16.gmra.mrb[0].mxu0 %v1502
  %v1603 = vpop.f32.mrb[0].mxu0
  %v1604 = vadd.f32 0.0, %v1603
  %v1605 = vpop.f32.mrb[0].mxu0
  %v1606 = vpop.f32.mrb[0].mxu0
  %v1607 = vadd.f32 0.0, %v1606
  %v1608 = vpop.f32.mrb[0].mxu0
  %1609 = vmatprep.mubr.bf16.mxu0 0
  %1610 = vmatmul.mubr.bf16.gmra.mrb[0].mxu0 %v1505
  %v1611 = vpop.f32.mrb[0].mxu0
  %v1612 = vadd.f32 0.0, %v1611
  %v1613 = vpop.f32.mrb[0].mxu0
  %v1614 = vpop.f32.mrb[0].mxu0
  %v1615 = vadd.f32 0.0, %v1614
  %v1616 = vpop.f32.mrb[0].mxu0
  %1617 = vmatprep.mubr.bf16.mxu0 0
  %1618 = vmatmul.mubr.bf16.gmra.mrb[0].mxu0 %v1508
  %v1619 = vpop.f32.mrb[0].mxu0
  %v1620 = vadd.f32 0.0, %v1619
  %v1621 = vpop.f32.mrb[0].mxu0
  %v1622 = vpop.f32.mrb[0].mxu0
  %v1623 = vadd.f32 0.0, %v1622
  %v1624 = vpop.f32.mrb[0].mxu0
  %1625 = vmatprep.mubr.bf16.mxu0 0
  %1626 = vmatmul.mubr.bf16.gmra.mrb[0].mxu0 %v1511
  %v1627 = vpop.f32.mrb[0].mxu0
  %v1628 = vadd.f32 0.0, %v1627
  %v1629 = vpop.f32.mrb[0].mxu0
  %v1630 = vpop.f32.mrb[0].mxu0
  %v1631 = vadd.f32 0.0, %v1630
  %v1632 = vpop.f32.mrb[0].mxu0
  %1633 = vmatprep.mubr.bf16.mxu0 0
  %1634 = vmatmul.mubr.bf16.gmra.mrb[0].mxu0 %v1514
  %v1635 = vpop.f32.mrb[0].mxu0
  %v1636 = vadd.f32 0.0, %v1635
  %v1637 = vpop.f32.mrb[0].mxu0
  %v1638 = vpop.f32.mrb[0].mxu0
  %v1639 = vadd.f32 0.0, %v1638
  %v1640 = vpop.f32.mrb[0].mxu0
  %1641 = vmatprep.mubr.bf16.mxu0 0
  %1642 = vmatmul.mubr.bf16.gmra.mrb[0].mxu0 %v1517
  %v1643 = vpop.f32.mrb[0].mxu0
  %v1644 = vadd.f32 0.0, %v1643
  %v1645 = vpop.f32.mrb[0].mxu0
  %v1646 = vpop.f32.mrb[0].mxu0
  %v1647 = vadd.f32 0.0, %v1646
  %v1648 = vpop.f32.mrb[0].mxu0
  %1649 = vmatprep.mubr.bf16.mxu0 0
  %1650 = vmatmul.mubr.bf16.gmra.mrb[0].mxu0 %v1520
  %v1651 = vpop.f32.mrb[0].mxu0
  %v1652 = vadd.f32 0.0, %v1651
  %v1653 = vpop.f32.mrb[0].mxu0
  %v1654 = vpop.f32.mrb[0].mxu0
  %v1655 = vadd.f32 0.0, %v1654
  %v1656 = vpop.f32.mrb[0].mxu0
  %1657 = vmatprep.mubr.bf16.mxu0 0
  %1658 = vmatmul.mubr.bf16.gmra.mrb[0].mxu0 %v1523
  %v1659 = vpop.f32.mrb[0].mxu0
  %v1660 = vadd.f32 0.0, %v1659
  %v1661 = vpop.f32.mrb[0].mxu0
  %v1662 = vpop.f32.mrb[0].mxu0
  %v1663 = vadd.f32 0.0, %v1662
  %v1664 = vpop.f32.mrb[0].mxu0
  %1665 = vmatprep.mubr.bf16.mxu0 0
  %1666 = vmatmul.mubr.bf16.gmra.mrb[0].mxu0 %v1526
  %v1667 = vpop.f32.mrb[0].mxu0
  %v1668 = vadd.f32 0.0, %v1667
  %v1669 = vpop.f32.mrb[0].mxu0
  %v1670 = vpop.f32.mrb[0].mxu0
  %v1671 = vadd.f32 0.0, %v1670
  %v1672 = vpop.f32.mrb[0].mxu0
  %1673 = vmatprep.mubr.bf16.mxu0 0
  %1674 = vmatmul.mubr.bf16.gmra.mrb[0].mxu0 %v1529
  %v1675 = vpop.f32.mrb[0].mxu0
  %v1676 = vadd.f32 0.0, %v1675
  %v1677 = vpop.f32.mrb[0].mxu0
  %v1678 = vpop.f32.mrb[0].mxu0
  %v1679 = vadd.f32 0.0, %v1678
  %v1680 = vpop.f32.mrb[0].mxu0
  %1681 = vmatprep.mubr.bf16.mxu0 0
  %1682 = vmatmul.mubr.bf16.gmra.mrb[0].mxu0 %v1532
  %v1683 = vpop.f32.mrb[0].mxu0
  %v1684 = vadd.f32 0.0, %v1683
  %v1685 = vpop.f32.mrb[0].mxu0
  %v1686 = vpop.f32.mrb[0].mxu0
  %v1687 = vadd.f32 0.0, %v1686
  %v1688 = vpop.f32.mrb[0].mxu0
  %1689 = vmatprep.mubr.bf16.mxu0 0
  %1690 = vmatmul.mubr.bf16.gmra.mrb[0].mxu0 %v1535
  %v1691 = vpop.f32.mrb[0].mxu0
  %v1692 = vadd.f32 0.0, %v1691
  %v1693 = vpop.f32.mrb[0].mxu0
  %v1694 = vpop.f32.mrb[0].mxu0
  %v1695 = vadd.f32 0.0, %v1694
  %v1696 = vpop.f32.mrb[0].mxu0
  %1697 = vdwg.mxu0
  %v1698 = vadd.f32 %v1251, %v1572
  %v1699 = vadd.f32 %v1254, %v1575
  %v1700 = vadd.f32 %v1259, %v1580
  %v1701 = vadd.f32 %v1262, %v1583
  %v1702 = vadd.f32 %v1267, %v1588
  %v1703 = vadd.f32 %v1270, %v1591
  %v1704 = vadd.f32 %v1275, %v1596
  %v1705 = vadd.f32 %v1278, %v1599
  %v1706 = vadd.f32 %v1283, %v1604
  %v1707 = vadd.f32 %v1286, %v1607
  %v1708 = vadd.f32 %v1291, %v1612
  %v1709 = vadd.f32 %v1294, %v1615
  %v1710 = vadd.f32 %v1299, %v1620
  %v1711 = vadd.f32 %v1302, %v1623
  %v1712 = vadd.f32 %v1307, %v1628
  %v1713 = vadd.f32 %v1310, %v1631
  %v1714 = vadd.f32 %v1315, %v1636
  %v1715 = vadd.f32 %v1318, %v1639
  %v1716 = vadd.f32 %v1323, %v1644
  %v1717 = vadd.f32 %v1326, %v1647
  %v1718 = vadd.f32 %v1331, %v1652
  %v1719 = vadd.f32 %v1334, %v1655
  %v1720 = vadd.f32 %v1339, %v1660
  %v1721 = vadd.f32 %v1342, %v1663
  %v1722 = vadd.f32 %v1347, %v1668
  %v1723 = vadd.f32 %v1350, %v1671
  %v1724 = vadd.f32 %v1355, %v1676
  %v1725 = vadd.f32 %v1358, %v1679
  %v1726 = vadd.f32 %v1363, %v1684
  %v1727 = vadd.f32 %v1366, %v1687
  %v1728 = vadd.f32 %v1371, %v1692
  %v1729 = vadd.f32 %v1374, %v1695
  %v1730 = vadd.f32 %v853, %v854
  %v1731 = vadd.f32 %v1730, %v855
  %v1732 = vadd.f32 %v1731, %v856
  %v1733 = vadd.f32 %v1732, %v857
  %v1734 = vadd.f32 %v1733, %v858
  %v1735 = vadd.f32 %v1734, %v859
  %v1736 = vadd.f32 %v1735, %v860
  %v1737 = vadd.f32 %v1736, %v861
  %v1738 = vadd.f32 %v1737, %v862
  %v1739 = vadd.f32 %v1738, %v863
  %v1740 = vadd.f32 %v1739, %v864
  %v1741 = vadd.f32 %v1740, %v865
  %v1742 = vadd.f32 %v1741, %v866
  %v1743 = vadd.f32 %v1742, %v867
  %v1744 = vadd.f32 %v1743, %v868
  %v1745 = vadd.f32 %v1744, %v869
  %v1746 = vadd.f32 %v1745, %v870
  %v1747 = vadd.f32 %v1746, %v871
  %v1748 = vadd.f32 %v1747, %v872
  %v1749 = vadd.f32 %v1748, %v873
  %v1750 = vadd.f32 %v1749, %v874
  %v1751 = vadd.f32 %v1750, %v875
  %v1752 = vadd.f32 %v1751, %v876
  %v1753 = vadd.f32 %v1752, %v877
  %v1754 = vadd.f32 %v1753, %v878
  %v1755 = vadd.f32 %v1754, %v879
  %v1756 = vadd.f32 %v1755, %v880
  %v1757 = vadd.f32 %v1756, %v881
  %v1758 = vadd.f32 %v1757, %v882
  %v1759 = vadd.f32 %v1758, %v883
  %v1760 = vadd.f32 %v1759, %v884
  %v1761 = vrot.slane %v1760, 4
  %v1762 = vadd.f32 %v1760, %v1761
  %v1763 = vrot.slane %v1762, 2
  %v1764 = vadd.f32 %v1762, %v1763
  %v1765 = vrot.slane %v1764, 1
  %v1766 = vadd.f32 %v1764, %v1765
  %v1767 = vadd.f32 %v1698, %v1699
  %v1768 = vadd.f32 %v1767, %v1700
  %v1769 = vadd.f32 %v1768, %v1701
  %v1770 = vadd.f32 %v1769, %v1702
  %v1771 = vadd.f32 %v1770, %v1703
  %v1772 = vadd.f32 %v1771, %v1704
  %v1773 = vadd.f32 %v1772, %v1705
  %v1774 = vadd.f32 %v1773, %v1706
  %v1775 = vadd.f32 %v1774, %v1707
  %v1776 = vadd.f32 %v1775, %v1708
  %v1777 = vadd.f32 %v1776, %v1709
  %v1778 = vadd.f32 %v1777, %v1710
  %v1779 = vadd.f32 %v1778, %v1711
  %v1780 = vadd.f32 %v1779, %v1712
  %v1781 = vadd.f32 %v1780, %v1713
  %v1782 = vadd.f32 %v1781, %v1714
  %v1783 = vadd.f32 %v1782, %v1715
  %v1784 = vadd.f32 %v1783, %v1716
  %v1785 = vadd.f32 %v1784, %v1717
  %v1786 = vadd.f32 %v1785, %v1718
  %v1787 = vadd.f32 %v1786, %v1719
  %v1788 = vadd.f32 %v1787, %v1720
  %v1789 = vadd.f32 %v1788, %v1721
  %v1790 = vadd.f32 %v1789, %v1722
  %v1791 = vadd.f32 %v1790, %v1723
  %v1792 = vadd.f32 %v1791, %v1724
  %v1793 = vadd.f32 %v1792, %v1725
  %v1794 = vadd.f32 %v1793, %v1726
  %v1795 = vadd.f32 %v1794, %v1727
  %v1796 = vadd.f32 %v1795, %v1728
  %v1797 = vadd.f32 %v1796, %v1729
  %v1798 = vrot.slane %v1797, 4
  %v1799 = vadd.f32 %v1797, %v1798
  %v1800 = vrot.slane %v1799, 2
  %v1801 = vadd.f32 %v1799, %v1800
  %v1802 = vrot.slane %v1801, 1
  %v1803 = vadd.f32 %v1801, %v1802
  %v1804 = vadd.f32 %v1766, %v1803
  %v1805 = vmul.f32 %v853, %v853
  %v1806 = vmul.f32 %v854, %v854
  %v1807 = vmul.f32 %v855, %v855
  %v1808 = vmul.f32 %v856, %v856
  %v1809 = vmul.f32 %v857, %v857
  %v1810 = vmul.f32 %v858, %v858
  %v1811 = vmul.f32 %v859, %v859
  %v1812 = vmul.f32 %v860, %v860
  %v1813 = vmul.f32 %v861, %v861
  %v1814 = vmul.f32 %v862, %v862
  %v1815 = vmul.f32 %v863, %v863
  %v1816 = vmul.f32 %v864, %v864
  %v1817 = vmul.f32 %v865, %v865
  %v1818 = vmul.f32 %v866, %v866
  %v1819 = vmul.f32 %v867, %v867
  %v1820 = vmul.f32 %v868, %v868
  %v1821 = vmul.f32 %v869, %v869
  %v1822 = vmul.f32 %v870, %v870
  %v1823 = vmul.f32 %v871, %v871
  %v1824 = vmul.f32 %v872, %v872
  %v1825 = vmul.f32 %v873, %v873
  %v1826 = vmul.f32 %v874, %v874
  %v1827 = vmul.f32 %v875, %v875
  %v1828 = vmul.f32 %v876, %v876
  %v1829 = vmul.f32 %v877, %v877
  %v1830 = vmul.f32 %v878, %v878
  %v1831 = vmul.f32 %v879, %v879
  %v1832 = vmul.f32 %v880, %v880
  %v1833 = vmul.f32 %v881, %v881
  %v1834 = vmul.f32 %v882, %v882
  %v1835 = vmul.f32 %v883, %v883
  %v1836 = vmul.f32 %v884, %v884
  %v1837 = vadd.f32 %v1805, %v1806
  %v1838 = vadd.f32 %v1837, %v1807
  %v1839 = vadd.f32 %v1838, %v1808
  %v1840 = vadd.f32 %v1839, %v1809
  %v1841 = vadd.f32 %v1840, %v1810
  %v1842 = vadd.f32 %v1841, %v1811
  %v1843 = vadd.f32 %v1842, %v1812
  %v1844 = vadd.f32 %v1843, %v1813
  %v1845 = vadd.f32 %v1844, %v1814
  %v1846 = vadd.f32 %v1845, %v1815
  %v1847 = vadd.f32 %v1846, %v1816
  %v1848 = vadd.f32 %v1847, %v1817
  %v1849 = vadd.f32 %v1848, %v1818
  %v1850 = vadd.f32 %v1849, %v1819
  %v1851 = vadd.f32 %v1850, %v1820
  %v1852 = vadd.f32 %v1851, %v1821
  %v1853 = vadd.f32 %v1852, %v1822
  %v1854 = vadd.f32 %v1853, %v1823
  %v1855 = vadd.f32 %v1854, %v1824
  %v1856 = vadd.f32 %v1855, %v1825
  %v1857 = vadd.f32 %v1856, %v1826
  %v1858 = vadd.f32 %v1857, %v1827
  %v1859 = vadd.f32 %v1858, %v1828
  %v1860 = vadd.f32 %v1859, %v1829
  %v1861 = vadd.f32 %v1860, %v1830
  %v1862 = vadd.f32 %v1861, %v1831
  %v1863 = vadd.f32 %v1862, %v1832
  %v1864 = vadd.f32 %v1863, %v1833
  %v1865 = vadd.f32 %v1864, %v1834
  %v1866 = vadd.f32 %v1865, %v1835
  %v1867 = vadd.f32 %v1866, %v1836
  %v1868 = vrot.slane %v1867, 4
  %v1869 = vadd.f32 %v1867, %v1868
  %v1870 = vrot.slane %v1869, 2
  %v1871 = vadd.f32 %v1869, %v1870
  %v1872 = vrot.slane %v1871, 1
  %v1873 = vadd.f32 %v1871, %v1872
  %v1874 = vmul.f32 %v1698, %v1698
  %v1875 = vmul.f32 %v1699, %v1699
  %v1876 = vmul.f32 %v1700, %v1700
  %v1877 = vmul.f32 %v1701, %v1701
  %v1878 = vmul.f32 %v1702, %v1702
  %v1879 = vmul.f32 %v1703, %v1703
  %v1880 = vmul.f32 %v1704, %v1704
  %v1881 = vmul.f32 %v1705, %v1705
  %v1882 = vmul.f32 %v1706, %v1706
  %v1883 = vmul.f32 %v1707, %v1707
  %v1884 = vmul.f32 %v1708, %v1708
  %v1885 = vmul.f32 %v1709, %v1709
  %v1886 = vmul.f32 %v1710, %v1710
  %v1887 = vmul.f32 %v1711, %v1711
  %v1888 = vmul.f32 %v1712, %v1712
  %v1889 = vmul.f32 %v1713, %v1713
  %v1890 = vmul.f32 %v1714, %v1714
  %v1891 = vmul.f32 %v1715, %v1715
  %v1892 = vmul.f32 %v1716, %v1716
  %v1893 = vmul.f32 %v1717, %v1717
  %v1894 = vmul.f32 %v1718, %v1718
  %v1895 = vmul.f32 %v1719, %v1719
  %v1896 = vmul.f32 %v1720, %v1720
  %v1897 = vmul.f32 %v1721, %v1721
  %v1898 = vmul.f32 %v1722, %v1722
  %v1899 = vmul.f32 %v1723, %v1723
  %v1900 = vmul.f32 %v1724, %v1724
  %v1901 = vmul.f32 %v1725, %v1725
  %v1902 = vmul.f32 %v1726, %v1726
  %v1903 = vmul.f32 %v1727, %v1727
  %v1904 = vmul.f32 %v1728, %v1728
  %v1905 = vmul.f32 %v1729, %v1729
  %v1906 = vadd.f32 %v1874, %v1875
  %v1907 = vadd.f32 %v1906, %v1876
  %v1908 = vadd.f32 %v1907, %v1877
  %v1909 = vadd.f32 %v1908, %v1878
  %v1910 = vadd.f32 %v1909, %v1879
  %v1911 = vadd.f32 %v1910, %v1880
  %v1912 = vadd.f32 %v1911, %v1881
  %v1913 = vadd.f32 %v1912, %v1882
  %v1914 = vadd.f32 %v1913, %v1883
  %v1915 = vadd.f32 %v1914, %v1884
  %v1916 = vadd.f32 %v1915, %v1885
  %v1917 = vadd.f32 %v1916, %v1886
  %v1918 = vadd.f32 %v1917, %v1887
  %v1919 = vadd.f32 %v1918, %v1888
  %v1920 = vadd.f32 %v1919, %v1889
  %v1921 = vadd.f32 %v1920, %v1890
  %v1922 = vadd.f32 %v1921, %v1891
  %v1923 = vadd.f32 %v1922, %v1892
  %v1924 = vadd.f32 %v1923, %v1893
  %v1925 = vadd.f32 %v1924, %v1894
  %v1926 = vadd.f32 %v1925, %v1895
  %v1927 = vadd.f32 %v1926, %v1896
  %v1928 = vadd.f32 %v1927, %v1897
  %v1929 = vadd.f32 %v1928, %v1898
  %v1930 = vadd.f32 %v1929, %v1899
  %v1931 = vadd.f32 %v1930, %v1900
  %v1932 = vadd.f32 %v1931, %v1901
  %v1933 = vadd.f32 %v1932, %v1902
  %v1934 = vadd.f32 %v1933, %v1903
  %v1935 = vadd.f32 %v1934, %v1904
  %v1936 = vadd.f32 %v1935, %v1905
  %v1937 = vrot.slane %v1936, 4
  %v1938 = vadd.f32 %v1936, %v1937
  %v1939 = vrot.slane %v1938, 2
  %v1940 = vadd.f32 %v1938, %v1939
  %v1941 = vrot.slane %v1940, 1
  %v1942 = vadd.f32 %v1940, %v1941
  %v1943 = vadd.f32 %v1873, %v1942
  %v1944 = vmul.f32 %v1804, 0.001953125
  %v1945 = vmul.f32 %v1943, 0.001953125
  %v1946 = vmul.f32 %v1944, %v1944
  %v1947 = vsub.f32 %v1945, %v1946
  %v1948 = vmax.f32 %v1947, 0.0
  %v1949 = vadd.f32 %v1948, 1e-05
  %v1950 = vrsqrt.pop %v1949
  %v1951 = vld [vmem:[%s1] sm:$0x1]
  %v1952 = vmul.f32 %v1950, %v1951
  %v1953 = vld [vmem:[%s1 + $0x1] sm:$0x1]
  %v1954 = vmul.f32 %v1944, %v1952
  %v1955 = vsub.f32 %v1953, %v1954
  %v1956 = vlaneseq
  %v1957 = vshrl.u32 %v1956, 7
  %v1958 = vsub.s32 0, %v1957
  %v1959 = vrot.slane %v1952, %v1958
  %v1960 = vmul.f32 %v853, %v1959
  %v1961 = vmul.f32 %v854, %v1959
  %v1962 = vmul.f32 %v855, %v1959
  %v1963 = vmul.f32 %v856, %v1959
  %v1964 = vmul.f32 %v857, %v1959
  %v1965 = vmul.f32 %v858, %v1959
  %v1966 = vmul.f32 %v859, %v1959
  %v1967 = vmul.f32 %v860, %v1959
  %v1968 = vmul.f32 %v861, %v1959
  %v1969 = vmul.f32 %v862, %v1959
  %v1970 = vmul.f32 %v863, %v1959
  %v1971 = vmul.f32 %v864, %v1959
  %v1972 = vmul.f32 %v865, %v1959
  %v1973 = vmul.f32 %v866, %v1959
  %v1974 = vmul.f32 %v867, %v1959
  %v1975 = vmul.f32 %v868, %v1959
  %v1976 = vmul.f32 %v869, %v1959
  %v1977 = vmul.f32 %v870, %v1959
  %v1978 = vmul.f32 %v871, %v1959
  %v1979 = vmul.f32 %v872, %v1959
  %v1980 = vmul.f32 %v873, %v1959
  %v1981 = vmul.f32 %v874, %v1959
  %v1982 = vmul.f32 %v875, %v1959
  %v1983 = vmul.f32 %v876, %v1959
  %v1984 = vmul.f32 %v877, %v1959
  %v1985 = vmul.f32 %v878, %v1959
  %v1986 = vmul.f32 %v879, %v1959
  %v1987 = vmul.f32 %v880, %v1959
  %v1988 = vmul.f32 %v881, %v1959
  %v1989 = vmul.f32 %v882, %v1959
  %v1990 = vmul.f32 %v883, %v1959
  %v1991 = vmul.f32 %v884, %v1959
  %v1992 = vlaneseq
  %v1993 = vshrl.u32 %v1992, 7
  %v1994 = vsub.s32 0, %v1993
  %v1995 = vrot.slane %v1955, %v1994
  %v1996 = vadd.f32 %v1960, %v1995
  %v1997 = vadd.f32 %v1961, %v1995
  %v1998 = vadd.f32 %v1962, %v1995
  %v1999 = vadd.f32 %v1963, %v1995
  %v2000 = vadd.f32 %v1964, %v1995
  %v2001 = vadd.f32 %v1965, %v1995
  %v2002 = vadd.f32 %v1966, %v1995
  %v2003 = vadd.f32 %v1967, %v1995
  %v2004 = vadd.f32 %v1968, %v1995
  %v2005 = vadd.f32 %v1969, %v1995
  %v2006 = vadd.f32 %v1970, %v1995
  %v2007 = vadd.f32 %v1971, %v1995
  %v2008 = vadd.f32 %v1972, %v1995
  %v2009 = vadd.f32 %v1973, %v1995
  %v2010 = vadd.f32 %v1974, %v1995
  %v2011 = vadd.f32 %v1975, %v1995
  %v2012 = vadd.f32 %v1976, %v1995
  %v2013 = vadd.f32 %v1977, %v1995
  %v2014 = vadd.f32 %v1978, %v1995
  %v2015 = vadd.f32 %v1979, %v1995
  %v2016 = vadd.f32 %v1980, %v1995
  %v2017 = vadd.f32 %v1981, %v1995
  %v2018 = vadd.f32 %v1982, %v1995
  %v2019 = vadd.f32 %v1983, %v1995
  %v2020 = vadd.f32 %v1984, %v1995
  %v2021 = vadd.f32 %v1985, %v1995
  %v2022 = vadd.f32 %v1986, %v1995
  %v2023 = vadd.f32 %v1987, %v1995
  %v2024 = vadd.f32 %v1988, %v1995
  %v2025 = vadd.f32 %v1989, %v1995
  %v2026 = vadd.f32 %v1990, %v1995
  %v2027 = vadd.f32 %v1991, %v1995
  %v2028 = vmax.f32 %v1996, 0.0
  %v2029 = vmax.f32 %v1997, 0.0
  %v2030 = vmax.f32 %v1998, 0.0
  %v2031 = vmax.f32 %v1999, 0.0
  %v2032 = vmax.f32 %v2000, 0.0
  %v2033 = vmax.f32 %v2001, 0.0
  %v2034 = vmax.f32 %v2002, 0.0
  %v2035 = vmax.f32 %v2003, 0.0
  %v2036 = vmax.f32 %v2004, 0.0
  %v2037 = vmax.f32 %v2005, 0.0
  %v2038 = vmax.f32 %v2006, 0.0
  %v2039 = vmax.f32 %v2007, 0.0
  %v2040 = vmax.f32 %v2008, 0.0
  %v2041 = vmax.f32 %v2009, 0.0
  %v2042 = vmax.f32 %v2010, 0.0
  %v2043 = vmax.f32 %v2011, 0.0
  %v2044 = vmax.f32 %v2012, 0.0
  %v2045 = vmax.f32 %v2013, 0.0
  %v2046 = vmax.f32 %v2014, 0.0
  %v2047 = vmax.f32 %v2015, 0.0
  %v2048 = vmax.f32 %v2016, 0.0
  %v2049 = vmax.f32 %v2017, 0.0
  %v2050 = vmax.f32 %v2018, 0.0
  %v2051 = vmax.f32 %v2019, 0.0
  %v2052 = vmax.f32 %v2020, 0.0
  %v2053 = vmax.f32 %v2021, 0.0
  %v2054 = vmax.f32 %v2022, 0.0
  %v2055 = vmax.f32 %v2023, 0.0
  %v2056 = vmax.f32 %v2024, 0.0
  %v2057 = vmax.f32 %v2025, 0.0
  %v2058 = vmax.f32 %v2026, 0.0
  %v2059 = vmax.f32 %v2027, 0.0
  %v2060 = vadd.f32 %v2028, %v2029
  %v2061 = vadd.f32 %v2060, %v2030
  %v2062 = vadd.f32 %v2061, %v2031
  %v2063 = vadd.f32 %v2062, %v2032
  %v2064 = vadd.f32 %v2063, %v2033
  %v2065 = vadd.f32 %v2064, %v2034
  %v2066 = vadd.f32 %v2065, %v2035
  %v2067 = vadd.f32 %v2066, %v2036
  %v2068 = vadd.f32 %v2067, %v2037
  %v2069 = vadd.f32 %v2068, %v2038
  %v2070 = vadd.f32 %v2069, %v2039
  %v2071 = vadd.f32 %v2070, %v2040
  %v2072 = vadd.f32 %v2071, %v2041
  %v2073 = vadd.f32 %v2072, %v2042
  %v2074 = vadd.f32 %v2073, %v2043
  %v2075 = vadd.f32 %v2074, %v2044
  %v2076 = vadd.f32 %v2075, %v2045
  %v2077 = vadd.f32 %v2076, %v2046
  %v2078 = vadd.f32 %v2077, %v2047
  %v2079 = vadd.f32 %v2078, %v2048
  %v2080 = vadd.f32 %v2079, %v2049
  %v2081 = vadd.f32 %v2080, %v2050
  %v2082 = vadd.f32 %v2081, %v2051
  %v2083 = vadd.f32 %v2082, %v2052
  %v2084 = vadd.f32 %v2083, %v2053
  %v2085 = vadd.f32 %v2084, %v2054
  %v2086 = vadd.f32 %v2085, %v2055
  %v2087 = vadd.f32 %v2086, %v2056
  %v2088 = vadd.f32 %v2087, %v2057
  %v2089 = vadd.f32 %v2088, %v2058
  %v2090 = vadd.f32 %v2089, %v2059
  %v2091 = vrot.slane %v2090, 4
  %v2092 = vadd.f32 %v2090, %v2091
  %v2093 = vrot.slane %v2092, 2
  %v2094 = vadd.f32 %v2092, %v2093
  %v2095 = vrot.slane %v2094, 1
  %v2096 = vadd.f32 %v2094, %v2095
  %v2097 = vmul.f32 %v2096, 0.00390625
  %v2098 = vmul.f32 %v1698, %v1959
  %v2099 = vmul.f32 %v1699, %v1959
  %v2100 = vmul.f32 %v1700, %v1959
  %v2101 = vmul.f32 %v1701, %v1959
  %v2102 = vmul.f32 %v1702, %v1959
  %v2103 = vmul.f32 %v1703, %v1959
  %v2104 = vmul.f32 %v1704, %v1959
  %v2105 = vmul.f32 %v1705, %v1959
  %v2106 = vmul.f32 %v1706, %v1959
  %v2107 = vmul.f32 %v1707, %v1959
  %v2108 = vmul.f32 %v1708, %v1959
  %v2109 = vmul.f32 %v1709, %v1959
  %v2110 = vmul.f32 %v1710, %v1959
  %v2111 = vmul.f32 %v1711, %v1959
  %v2112 = vmul.f32 %v1712, %v1959
  %v2113 = vmul.f32 %v1713, %v1959
  %v2114 = vmul.f32 %v1714, %v1959
  %v2115 = vmul.f32 %v1715, %v1959
  %v2116 = vmul.f32 %v1716, %v1959
  %v2117 = vmul.f32 %v1717, %v1959
  %v2118 = vmul.f32 %v1718, %v1959
  %v2119 = vmul.f32 %v1719, %v1959
  %v2120 = vmul.f32 %v1720, %v1959
  %v2121 = vmul.f32 %v1721, %v1959
  %v2122 = vmul.f32 %v1722, %v1959
  %v2123 = vmul.f32 %v1723, %v1959
  %v2124 = vmul.f32 %v1724, %v1959
  %v2125 = vmul.f32 %v1725, %v1959
  %v2126 = vmul.f32 %v1726, %v1959
  %v2127 = vmul.f32 %v1727, %v1959
  %v2128 = vmul.f32 %v1728, %v1959
  %v2129 = vmul.f32 %v1729, %v1959
  %v2130 = vadd.f32 %v2098, %v1995
  %v2131 = vadd.f32 %v2099, %v1995
  %v2132 = vadd.f32 %v2100, %v1995
  %v2133 = vadd.f32 %v2101, %v1995
  %v2134 = vadd.f32 %v2102, %v1995
  %v2135 = vadd.f32 %v2103, %v1995
  %v2136 = vadd.f32 %v2104, %v1995
  %v2137 = vadd.f32 %v2105, %v1995
  %v2138 = vadd.f32 %v2106, %v1995
  %v2139 = vadd.f32 %v2107, %v1995
  %v2140 = vadd.f32 %v2108, %v1995
  %v2141 = vadd.f32 %v2109, %v1995
  %v2142 = vadd.f32 %v2110, %v1995
  %v2143 = vadd.f32 %v2111, %v1995
  %v2144 = vadd.f32 %v2112, %v1995
  %v2145 = vadd.f32 %v2113, %v1995
  %v2146 = vadd.f32 %v2114, %v1995
  %v2147 = vadd.f32 %v2115, %v1995
  %v2148 = vadd.f32 %v2116, %v1995
  %v2149 = vadd.f32 %v2117, %v1995
  %v2150 = vadd.f32 %v2118, %v1995
  %v2151 = vadd.f32 %v2119, %v1995
  %v2152 = vadd.f32 %v2120, %v1995
  %v2153 = vadd.f32 %v2121, %v1995
  %v2154 = vadd.f32 %v2122, %v1995
  %v2155 = vadd.f32 %v2123, %v1995
  %v2156 = vadd.f32 %v2124, %v1995
  %v2157 = vadd.f32 %v2125, %v1995
  %v2158 = vadd.f32 %v2126, %v1995
  %v2159 = vadd.f32 %v2127, %v1995
  %v2160 = vadd.f32 %v2128, %v1995
  %v2161 = vadd.f32 %v2129, %v1995
  %v2162 = vmax.f32 %v2130, 0.0
  %v2163 = vmax.f32 %v2131, 0.0
  %v2164 = vmax.f32 %v2132, 0.0
  %v2165 = vmax.f32 %v2133, 0.0
  %v2166 = vmax.f32 %v2134, 0.0
  %v2167 = vmax.f32 %v2135, 0.0
  %v2168 = vmax.f32 %v2136, 0.0
  %v2169 = vmax.f32 %v2137, 0.0
  %v2170 = vmax.f32 %v2138, 0.0
  %v2171 = vmax.f32 %v2139, 0.0
  %v2172 = vmax.f32 %v2140, 0.0
  %v2173 = vmax.f32 %v2141, 0.0
  %v2174 = vmax.f32 %v2142, 0.0
  %v2175 = vmax.f32 %v2143, 0.0
  %v2176 = vmax.f32 %v2144, 0.0
  %v2177 = vmax.f32 %v2145, 0.0
  %v2178 = vmax.f32 %v2146, 0.0
  %v2179 = vmax.f32 %v2147, 0.0
  %v2180 = vmax.f32 %v2148, 0.0
  %v2181 = vmax.f32 %v2149, 0.0
  %v2182 = vmax.f32 %v2150, 0.0
  %v2183 = vmax.f32 %v2151, 0.0
  %v2184 = vmax.f32 %v2152, 0.0
  %v2185 = vmax.f32 %v2153, 0.0
  %v2186 = vmax.f32 %v2154, 0.0
  %v2187 = vmax.f32 %v2155, 0.0
  %v2188 = vmax.f32 %v2156, 0.0
  %v2189 = vmax.f32 %v2157, 0.0
  %v2190 = vmax.f32 %v2158, 0.0
  %v2191 = vmax.f32 %v2159, 0.0
  %v2192 = vmax.f32 %v2160, 0.0
  %v2193 = vmax.f32 %v2161, 0.0
  %v2194 = vadd.f32 %v2162, %v2163
  %v2195 = vadd.f32 %v2194, %v2164
  %v2196 = vadd.f32 %v2195, %v2165
  %v2197 = vadd.f32 %v2196, %v2166
  %v2198 = vadd.f32 %v2197, %v2167
  %v2199 = vadd.f32 %v2198, %v2168
  %v2200 = vadd.f32 %v2199, %v2169
  %v2201 = vadd.f32 %v2200, %v2170
  %v2202 = vadd.f32 %v2201, %v2171
  %v2203 = vadd.f32 %v2202, %v2172
  %v2204 = vadd.f32 %v2203, %v2173
  %v2205 = vadd.f32 %v2204, %v2174
  %v2206 = vadd.f32 %v2205, %v2175
  %v2207 = vadd.f32 %v2206, %v2176
  %v2208 = vadd.f32 %v2207, %v2177
  %v2209 = vadd.f32 %v2208, %v2178
  %v2210 = vadd.f32 %v2209, %v2179
  %v2211 = vadd.f32 %v2210, %v2180
  %v2212 = vadd.f32 %v2211, %v2181
  %v2213 = vadd.f32 %v2212, %v2182
  %v2214 = vadd.f32 %v2213, %v2183
  %v2215 = vadd.f32 %v2214, %v2184
  %v2216 = vadd.f32 %v2215, %v2185
  %v2217 = vadd.f32 %v2216, %v2186
  %v2218 = vadd.f32 %v2217, %v2187
  %v2219 = vadd.f32 %v2218, %v2188
  %v2220 = vadd.f32 %v2219, %v2189
  %v2221 = vadd.f32 %v2220, %v2190
  %v2222 = vadd.f32 %v2221, %v2191
  %v2223 = vadd.f32 %v2222, %v2192
  %v2224 = vadd.f32 %v2223, %v2193
  %v2225 = vrot.slane %v2224, 4
  %v2226 = vadd.f32 %v2224, %v2225
  %v2227 = vrot.slane %v2226, 2
  %v2228 = vadd.f32 %v2226, %v2227
  %v2229 = vrot.slane %v2228, 1
  %v2230 = vadd.f32 %v2228, %v2229
  %v2231 = vmul.f32 %v2230, 0.00390625
  %vm2232 = vcmask 1040384
  %v2233 = vsel %vm2232, %v2097, %v2231
  %vm2234 = vcmask 1041408
  %v2235 = vsel %vm2234, %v2233, 0.0
  %v2236 = vpack.c.bf16 %v2235, %v2235
  %v2237 = vld [vmem:[%s2 + $0x18] sm:$0xf]
  %v2238 = vld [vmem:[%s2 + $0x1c] sm:$0xf]
  %v2239 = vld [vmem:[%s2 + $0x20] sm:$0xf]
  %v2240 = vld [vmem:[%s2 + $0x24] sm:$0xf]
  %v2241 = vld [vmem:[%s2 + $0x28] sm:$0xf]
  %v2242 = vld [vmem:[%s2 + $0x2c] sm:$0xf]
  %v2243 = vld [vmem:[%s2 + $0x30] sm:$0xf]
  %v2244 = vld [vmem:[%s2 + $0x34] sm:$0xf]
  %v2245 = vld [vmem:[%s2 + $0x38] sm:$0xf]
  %v2246 = vld [vmem:[%s2 + $0x3c] sm:$0xf]
  %v2247 = vld [vmem:[%s2 + $0x40] sm:$0xf]
  %v2248 = vld [vmem:[%s2 + $0x44] sm:$0xf]
  %v2249 = vld [vmem:[%s2 + $0x48] sm:$0xf]
  %v2250 = vld [vmem:[%s2 + $0x4c] sm:$0xf]
  %v2251 = vld [vmem:[%s2 + $0x50] sm:$0xf]
  %v2252 = vld [vmem:[%s2 + $0x54] sm:$0xf]
  %v2253 = vld [vmem:[%s1 + $0x2] sm:$0x1]
  %v2254 = vlaneseq
  %v2255 = vshrl.u32 %v2254, 7
  %v2256 = vsub.s32 0, %v2255
  %v2257 = vrot.slane %v2253, %v2256
  %v2274 = vunpack.c.l.b16 %v2237
  %v2275 = vunpack.c.l.b16 %v2238
  %v2276 = vunpack.c.l.b16 %v2239
  %v2277 = vunpack.c.l.b16 %v2240
  %v2278 = vunpack.c.l.b16 %v2241
  %v2279 = vunpack.c.l.b16 %v2242
  %v2280 = vunpack.c.l.b16 %v2243
  %v2281 = vunpack.c.l.b16 %v2244
  %v2282 = vunpack.c.l.b16 %v2245
  %v2283 = vunpack.c.l.b16 %v2246
  %v2284 = vunpack.c.l.b16 %v2247
  %v2285 = vunpack.c.l.b16 %v2248
  %v2286 = vunpack.c.l.b16 %v2249
  %v2287 = vunpack.c.l.b16 %v2250
  %v2288 = vunpack.c.l.b16 %v2251
  %v2289 = vunpack.c.l.b16 %v2252
  %v2290 = vpack.c.b16 %v2275, %v2274
  %v2291 = vpack.c.b16 %v2277, %v2276
  %v2292 = vpack.c.b16 %v2279, %v2278
  %v2293 = vpack.c.b16 %v2281, %v2280
  %v2294 = vpack.c.b16 %v2283, %v2282
  %v2295 = vpack.c.b16 %v2285, %v2284
  %v2296 = vpack.c.b16 %v2287, %v2286
  %v2297 = vpack.c.b16 %v2289, %v2288
  %2306 = vmatprep.subr.bf16.mxu0 0
  %2307 = vmatpush1.bf16.msra.mxu0 %v2290
  %2308 = vmatprep.subr.bf16.mxu0 0
  %2309 = vmatpush1.bf16.msra.mxu0 %v2291
  %2310 = vmatprep.subr.bf16.mxu0 0
  %2311 = vmatpush1.bf16.msra.mxu0 %v2292
  %2312 = vmatprep.subr.bf16.mxu0 0
  %2313 = vmatpush1.bf16.msra.mxu0 %v2293
  %2314 = vmatprep.subr.bf16.mxu0 0
  %2315 = vmatpush1.bf16.msra.mxu0 %v2294
  %2316 = vmatprep.subr.bf16.mxu0 0
  %2317 = vmatpush1.bf16.msra.mxu0 %v2295
  %2318 = vmatprep.subr.bf16.mxu0 0
  %2319 = vmatpush1.bf16.msra.mxu0 %v2296
  %2320 = vmatprep.subr.bf16.mxu0 0
  %2321 = vmatpush1.bf16.msra.mxu0 %v2297
  %2322 = vmatprep.subr.bf16.mxu0 0
  %2323 = vmatpush1.bf16.msra.mxu0 0
  %2324 = vmatprep.subr.bf16.mxu0 0
  %2325 = vmatpush1.bf16.msra.mxu0 0
  %2326 = vmatprep.subr.bf16.mxu0 0
  %2327 = vmatpush1.bf16.msra.mxu0 0
  %2328 = vmatprep.subr.bf16.mxu0 0
  %2329 = vmatpush1.bf16.msra.mxu0 0
  %2330 = vmatprep.subr.bf16.mxu0 0
  %2331 = vmatpush1.bf16.msra.mxu0 0
  %2332 = vmatprep.subr.bf16.mxu0 0
  %2333 = vmatpush1.bf16.msra.mxu0 0
  %2334 = vmatprep.subr.bf16.mxu0 0
  %2335 = vmatpush1.bf16.msra.mxu0 0
  %2336 = vmatprep.subr.bf16.mxu0 0
  %2337 = vmatpush1.bf16.msra.mxu0 0
  %2338 = vmatprep.mubr.bf16.mxu0 0
  %2339 = vmatmul.mubr.bf16.gmra.mrb[0].mxu0 %v2236
  %v2340 = vpop.f32.mrb[0].mxu0
  %v2341 = vadd.f32 %v2257, %v2340
  %v2342 = vpop.f32.mrb[0].mxu0
  %v2343 = vpop.f32.mrb[0].mxu0
  %v2344 = vpop.f32.mrb[0].mxu0
  %2345 = vdwg.mxu0
  %v2346 = vsel %vm2234, %v2341, 0.0
  %v2347 = vrot.slane %v2346, 4
  %v2348 = vadd.f32 %v2346, %v2347
  %v2349 = vrot.slane %v2348, 2
  %v2350 = vadd.f32 %v2348, %v2349
  %v2351 = vrot.slane %v2350, 1
  %v2352 = vadd.f32 %v2350, %v2351
  %v2353 = vmul.f32 %v2352, 0.5
  %v2354 = vmul.f32 %v2341, %v2341
  %v2355 = vsel %vm2234, %v2354, 0.0
  %v2356 = vrot.slane %v2355, 4
  %v2357 = vadd.f32 %v2355, %v2356
  %v2358 = vrot.slane %v2357, 2
  %v2359 = vadd.f32 %v2357, %v2358
  %v2360 = vrot.slane %v2359, 1
  %v2361 = vadd.f32 %v2359, %v2360
  %v2362 = vmul.f32 %v2361, 0.5
  %v2363 = vmul.f32 %v2353, %v2353
  %v2364 = vsub.f32 %v2362, %v2363
  %v2365 = vmax.f32 %v2364, 0.0
  %v2366 = vadd.f32 %v2365, 1e-05
  %v2367 = vrsqrt.pop %v2366
  %v2368 = vld [vmem:[%s1 + $0x3] sm:$0x1]
  %v2369 = vmul.f32 %v2367, %v2368
  %v2370 = vld [vmem:[%s1 + $0x4] sm:$0x1]
  %v2371 = vmul.f32 %v2353, %v2369
  %v2372 = vsub.f32 %v2370, %v2371
  %v2373 = vlaneseq
  %v2374 = vshrl.u32 %v2373, 7
  %v2375 = vsub.s32 0, %v2374
  %v2376 = vrot.slane %v2369, %v2375
  %v2377 = vmul.f32 %v2341, %v2376
  %v2378 = vlaneseq
  %v2379 = vshrl.u32 %v2378, 7
  %v2380 = vsub.s32 0, %v2379
  %v2381 = vrot.slane %v2372, %v2380
  %v2382 = vadd.f32 %v2377, %v2381
  %v2383 = vmax.f32 %v2382, 0.0
  %v2384 = vpack.c.bf16 %v2383, %v2383
  %v2385 = vld [vmem:[%s2 + $0x58] sm:$0xf]
  %v2386 = vld [vmem:[%s2 + $0x5c] sm:$0xf]
  %v2387 = vld [vmem:[%s2 + $0x60] sm:$0xf]
  %v2388 = vld [vmem:[%s2 + $0x64] sm:$0xf]
  %v2389 = vld [vmem:[%s2 + $0x68] sm:$0xf]
  %v2390 = vld [vmem:[%s2 + $0x6c] sm:$0xf]
  %v2391 = vld [vmem:[%s2 + $0x70] sm:$0xf]
  %v2392 = vld [vmem:[%s2 + $0x74] sm:$0xf]
  %v2393 = vld [vmem:[%s2 + $0x78] sm:$0xf]
  %v2394 = vld [vmem:[%s2 + $0x7c] sm:$0xf]
  %v2395 = vld [vmem:[%s2 + $0x80] sm:$0xf]
  %v2396 = vld [vmem:[%s2 + $0x84] sm:$0xf]
  %v2397 = vld [vmem:[%s2 + $0x88] sm:$0xf]
  %v2398 = vld [vmem:[%s2 + $0x8c] sm:$0xf]
  %v2399 = vld [vmem:[%s2 + $0x90] sm:$0xf]
  %v2400 = vld [vmem:[%s2 + $0x94] sm:$0xf]
  %v2401 = vld [vmem:[%s1 + $0x5] sm:$0x1]
  %v2402 = vlaneseq
  %v2403 = vshrl.u32 %v2402, 7
  %v2404 = vsub.s32 0, %v2403
  %v2405 = vrot.slane %v2401, %v2404
  %v2422 = vunpack.c.l.b16 %v2385
  %v2423 = vunpack.c.l.b16 %v2386
  %v2424 = vunpack.c.l.b16 %v2387
  %v2425 = vunpack.c.l.b16 %v2388
  %v2426 = vunpack.c.l.b16 %v2389
  %v2427 = vunpack.c.l.b16 %v2390
  %v2428 = vunpack.c.l.b16 %v2391
  %v2429 = vunpack.c.l.b16 %v2392
  %v2430 = vunpack.c.l.b16 %v2393
  %v2431 = vunpack.c.l.b16 %v2394
  %v2432 = vunpack.c.l.b16 %v2395
  %v2433 = vunpack.c.l.b16 %v2396
  %v2434 = vunpack.c.l.b16 %v2397
  %v2435 = vunpack.c.l.b16 %v2398
  %v2436 = vunpack.c.l.b16 %v2399
  %v2437 = vunpack.c.l.b16 %v2400
  %v2438 = vpack.c.b16 %v2423, %v2422
  %v2439 = vpack.c.b16 %v2425, %v2424
  %v2440 = vpack.c.b16 %v2427, %v2426
  %v2441 = vpack.c.b16 %v2429, %v2428
  %v2442 = vpack.c.b16 %v2431, %v2430
  %v2443 = vpack.c.b16 %v2433, %v2432
  %v2444 = vpack.c.b16 %v2435, %v2434
  %v2445 = vpack.c.b16 %v2437, %v2436
  %2454 = vmatprep.subr.bf16.mxu0 0
  %2455 = vmatpush1.bf16.msra.mxu0 %v2438
  %2456 = vmatprep.subr.bf16.mxu0 0
  %2457 = vmatpush1.bf16.msra.mxu0 %v2439
  %2458 = vmatprep.subr.bf16.mxu0 0
  %2459 = vmatpush1.bf16.msra.mxu0 %v2440
  %2460 = vmatprep.subr.bf16.mxu0 0
  %2461 = vmatpush1.bf16.msra.mxu0 %v2441
  %2462 = vmatprep.subr.bf16.mxu0 0
  %2463 = vmatpush1.bf16.msra.mxu0 %v2442
  %2464 = vmatprep.subr.bf16.mxu0 0
  %2465 = vmatpush1.bf16.msra.mxu0 %v2443
  %2466 = vmatprep.subr.bf16.mxu0 0
  %2467 = vmatpush1.bf16.msra.mxu0 %v2444
  %2468 = vmatprep.subr.bf16.mxu0 0
  %2469 = vmatpush1.bf16.msra.mxu0 %v2445
  %2470 = vmatprep.subr.bf16.mxu0 0
  %2471 = vmatpush1.bf16.msra.mxu0 0
  %2472 = vmatprep.subr.bf16.mxu0 0
  %2473 = vmatpush1.bf16.msra.mxu0 0
  %2474 = vmatprep.subr.bf16.mxu0 0
  %2475 = vmatpush1.bf16.msra.mxu0 0
  %2476 = vmatprep.subr.bf16.mxu0 0
  %2477 = vmatpush1.bf16.msra.mxu0 0
  %2478 = vmatprep.subr.bf16.mxu0 0
  %2479 = vmatpush1.bf16.msra.mxu0 0
  %2480 = vmatprep.subr.bf16.mxu0 0
  %2481 = vmatpush1.bf16.msra.mxu0 0
  %2482 = vmatprep.subr.bf16.mxu0 0
  %2483 = vmatpush1.bf16.msra.mxu0 0
  %2484 = vmatprep.subr.bf16.mxu0 0
  %2485 = vmatpush1.bf16.msra.mxu0 0
  %2486 = vmatprep.mubr.bf16.mxu0 0
  %2487 = vmatmul.mubr.bf16.gmra.mrb[0].mxu0 %v2384
  %v2488 = vpop.f32.mrb[0].mxu0
  %v2489 = vadd.f32 %v2405, %v2488
  %v2490 = vpop.f32.mrb[0].mxu0
  %v2491 = vpop.f32.mrb[0].mxu0
  %v2492 = vpop.f32.mrb[0].mxu0
  %2493 = vdwg.mxu0
  %v2494 = vsel %vm2234, %v2489, 0.0
  %v2495 = vrot.slane %v2494, 4
  %v2496 = vadd.f32 %v2494, %v2495
  %v2497 = vrot.slane %v2496, 2
  %v2498 = vadd.f32 %v2496, %v2497
  %v2499 = vrot.slane %v2498, 1
  %v2500 = vadd.f32 %v2498, %v2499
  %v2501 = vmul.f32 %v2500, 0.5
  %v2502 = vmul.f32 %v2489, %v2489
  %v2503 = vsel %vm2234, %v2502, 0.0
  %v2504 = vrot.slane %v2503, 4
  %v2505 = vadd.f32 %v2503, %v2504
  %v2506 = vrot.slane %v2505, 2
  %v2507 = vadd.f32 %v2505, %v2506
  %v2508 = vrot.slane %v2507, 1
  %v2509 = vadd.f32 %v2507, %v2508
  %v2510 = vmul.f32 %v2509, 0.5
  %v2511 = vmul.f32 %v2501, %v2501
  %v2512 = vsub.f32 %v2510, %v2511
  %v2513 = vmax.f32 %v2512, 0.0
  %v2514 = vadd.f32 %v2513, 1e-05
  %v2515 = vrsqrt.pop %v2514
  %v2516 = vld [vmem:[%s1 + $0x6] sm:$0x1]
  %v2517 = vmul.f32 %v2515, %v2516
  %v2518 = vld [vmem:[%s1 + $0x7] sm:$0x1]
  %v2519 = vmul.f32 %v2501, %v2517
  %v2520 = vsub.f32 %v2518, %v2519
  %v2521 = vlaneseq
  %v2522 = vshrl.u32 %v2521, 7
  %v2523 = vsub.s32 0, %v2522
  %v2524 = vrot.slane %v2517, %v2523
  %v2525 = vmul.f32 %v2489, %v2524
  %v2526 = vlaneseq
  %v2527 = vshrl.u32 %v2526, 7
  %v2528 = vsub.s32 0, %v2527
  %v2529 = vrot.slane %v2520, %v2528
  %v2530 = vadd.f32 %v2525, %v2529
  %v2531 = vmax.f32 %v2530, 0.0
  %v2532 = vpack.c.bf16 %v2531, %v2531
  %v2533 = vld [vmem:[%s2 + $0x98] sm:$0xf]
  %v2534 = vld [vmem:[%s2 + $0x9c] sm:$0xf]
  %v2535 = vld [vmem:[%s2 + $0xa0] sm:$0xf]
  %v2536 = vld [vmem:[%s2 + $0xa4] sm:$0xf]
  %v2537 = vld [vmem:[%s2 + $0xa8] sm:$0xf]
  %v2538 = vld [vmem:[%s2 + $0xac] sm:$0xf]
  %v2539 = vld [vmem:[%s2 + $0xb0] sm:$0xf]
  %v2540 = vld [vmem:[%s2 + $0xb4] sm:$0xf]
  %v2541 = vld [vmem:[%s2 + $0xb8] sm:$0xf]
  %v2542 = vld [vmem:[%s2 + $0xbc] sm:$0xf]
  %v2543 = vld [vmem:[%s2 + $0xc0] sm:$0xf]
  %v2544 = vld [vmem:[%s2 + $0xc4] sm:$0xf]
  %v2545 = vld [vmem:[%s2 + $0xc8] sm:$0xf]
  %v2546 = vld [vmem:[%s2 + $0xcc] sm:$0xf]
  %v2547 = vld [vmem:[%s2 + $0xd0] sm:$0xf]
  %v2548 = vld [vmem:[%s2 + $0xd4] sm:$0xf]
  %v2549 = vld [vmem:[%s1 + $0x8] sm:$0x1]
  %v2550 = vlaneseq
  %v2551 = vshrl.u32 %v2550, 7
  %v2552 = vsub.s32 0, %v2551
  %v2553 = vrot.slane %v2549, %v2552
  %v2570 = vunpack.c.l.b16 %v2533
  %v2571 = vunpack.c.l.b16 %v2534
  %v2572 = vunpack.c.l.b16 %v2535
  %v2573 = vunpack.c.l.b16 %v2536
  %v2574 = vunpack.c.l.b16 %v2537
  %v2575 = vunpack.c.l.b16 %v2538
  %v2576 = vunpack.c.l.b16 %v2539
  %v2577 = vunpack.c.l.b16 %v2540
  %v2578 = vunpack.c.l.b16 %v2541
  %v2579 = vunpack.c.l.b16 %v2542
  %v2580 = vunpack.c.l.b16 %v2543
  %v2581 = vunpack.c.l.b16 %v2544
  %v2582 = vunpack.c.l.b16 %v2545
  %v2583 = vunpack.c.l.b16 %v2546
  %v2584 = vunpack.c.l.b16 %v2547
  %v2585 = vunpack.c.l.b16 %v2548
  %v2586 = vpack.c.b16 %v2571, %v2570
  %v2587 = vpack.c.b16 %v2573, %v2572
  %v2588 = vpack.c.b16 %v2575, %v2574
  %v2589 = vpack.c.b16 %v2577, %v2576
  %v2590 = vpack.c.b16 %v2579, %v2578
  %v2591 = vpack.c.b16 %v2581, %v2580
  %v2592 = vpack.c.b16 %v2583, %v2582
  %v2593 = vpack.c.b16 %v2585, %v2584
  %2602 = vmatprep.subr.bf16.mxu0 0
  %2603 = vmatpush1.bf16.msra.mxu0 %v2586
  %2604 = vmatprep.subr.bf16.mxu0 0
  %2605 = vmatpush1.bf16.msra.mxu0 %v2587
  %2606 = vmatprep.subr.bf16.mxu0 0
  %2607 = vmatpush1.bf16.msra.mxu0 %v2588
  %2608 = vmatprep.subr.bf16.mxu0 0
  %2609 = vmatpush1.bf16.msra.mxu0 %v2589
  %2610 = vmatprep.subr.bf16.mxu0 0
  %2611 = vmatpush1.bf16.msra.mxu0 %v2590
  %2612 = vmatprep.subr.bf16.mxu0 0
  %2613 = vmatpush1.bf16.msra.mxu0 %v2591
  %2614 = vmatprep.subr.bf16.mxu0 0
  %2615 = vmatpush1.bf16.msra.mxu0 %v2592
  %2616 = vmatprep.subr.bf16.mxu0 0
  %2617 = vmatpush1.bf16.msra.mxu0 %v2593
  %2618 = vmatprep.subr.bf16.mxu0 0
  %2619 = vmatpush1.bf16.msra.mxu0 0
  %2620 = vmatprep.subr.bf16.mxu0 0
  %2621 = vmatpush1.bf16.msra.mxu0 0
  %2622 = vmatprep.subr.bf16.mxu0 0
  %2623 = vmatpush1.bf16.msra.mxu0 0
  %2624 = vmatprep.subr.bf16.mxu0 0
  %2625 = vmatpush1.bf16.msra.mxu0 0
  %2626 = vmatprep.subr.bf16.mxu0 0
  %2627 = vmatpush1.bf16.msra.mxu0 0
  %2628 = vmatprep.subr.bf16.mxu0 0
  %2629 = vmatpush1.bf16.msra.mxu0 0
  %2630 = vmatprep.subr.bf16.mxu0 0
  %2631 = vmatpush1.bf16.msra.mxu0 0
  %2632 = vmatprep.subr.bf16.mxu0 0
  %2633 = vmatpush1.bf16.msra.mxu0 0
  %2634 = vmatprep.mubr.bf16.mxu0 0
  %2635 = vmatmul.mubr.bf16.gmra.mrb[0].mxu0 %v2532
  %v2636 = vpop.f32.mrb[0].mxu0
  %v2637 = vadd.f32 %v2553, %v2636
  %v2638 = vpop.f32.mrb[0].mxu0
  %v2639 = vpop.f32.mrb[0].mxu0
  %v2640 = vpop.f32.mrb[0].mxu0
  %2641 = vdwg.mxu0
  %v2642 = vmul.f32 %v2637, %v2637
  %2643 = vadd.xlane.f32.xlu0 %v2642
  %v2644 = vpop.xlane.xlu0 %2643
  %v2645 = vadd.f32 %v2644, 1e-12
  %v2646 = vrsqrt.pop %v2645
  %v2647 = vmul.f32 %v2646, 20.0
  %v2648 = vmul.f32 %v2637, %v2647
  %v2649 = vld [vmem:[%s2 + $0xd8] sm:$0xf]
  %v2650 = vld [vmem:[%s2 + $0xdc] sm:$0xf]
  %v2651 = vld [vmem:[%s2 + $0xe0] sm:$0xf]
  %v2652 = vld [vmem:[%s2 + $0xe4] sm:$0xf]
  %v2653 = vld [vmem:[%s2 + $0xe8] sm:$0xf]
  %v2654 = vld [vmem:[%s2 + $0xec] sm:$0xf]
  %v2655 = vld [vmem:[%s2 + $0xf0] sm:$0xf]
  %v2656 = vld [vmem:[%s2 + $0xf4] sm:$0xf]
  %v2657 = vld [vmem:[%s2 + $0xf8] sm:$0xf]
  %v2658 = vld [vmem:[%s2 + $0xfc] sm:$0xf]
  %v2659 = vld [vmem:[%s2 + $0x100] sm:$0xf]
  %v2660 = vld [vmem:[%s2 + $0x104] sm:$0xf]
  %v2661 = vld [vmem:[%s2 + $0x108] sm:$0xf]
  %v2662 = vld [vmem:[%s2 + $0x10c] sm:$0xf]
  %v2663 = vld [vmem:[%s2 + $0x110] sm:$0xf]
  %v2664 = vld [vmem:[%s2 + $0x114] sm:$0xf]
  %v2665 = vunpack.c.l.bf16 %v2649
  %v2666 = vunpack.c.l.bf16 %v2650
  %v2667 = vunpack.c.l.bf16 %v2651
  %v2668 = vunpack.c.l.bf16 %v2652
  %v2669 = vunpack.c.l.bf16 %v2653
  %v2670 = vunpack.c.l.bf16 %v2654
  %v2671 = vunpack.c.l.bf16 %v2655
  %v2672 = vunpack.c.l.bf16 %v2656
  %v2673 = vunpack.c.l.bf16 %v2657
  %v2674 = vunpack.c.l.bf16 %v2658
  %v2675 = vunpack.c.l.bf16 %v2659
  %v2676 = vunpack.c.l.bf16 %v2660
  %v2677 = vunpack.c.l.bf16 %v2661
  %v2678 = vunpack.c.l.bf16 %v2662
  %v2679 = vunpack.c.l.bf16 %v2663
  %v2680 = vunpack.c.l.bf16 %v2664
  %v2681 = vmul.f32 %v2665, %v2665
  %v2682 = vmul.f32 %v2666, %v2666
  %v2683 = vmul.f32 %v2667, %v2667
  %v2684 = vmul.f32 %v2668, %v2668
  %v2685 = vmul.f32 %v2669, %v2669
  %v2686 = vmul.f32 %v2670, %v2670
  %v2687 = vmul.f32 %v2671, %v2671
  %v2688 = vmul.f32 %v2672, %v2672
  %v2689 = vmul.f32 %v2673, %v2673
  %v2690 = vmul.f32 %v2674, %v2674
  %v2691 = vmul.f32 %v2675, %v2675
  %v2692 = vmul.f32 %v2676, %v2676
  %v2693 = vmul.f32 %v2677, %v2677
  %v2694 = vmul.f32 %v2678, %v2678
  %v2695 = vmul.f32 %v2679, %v2679
  %v2696 = vmul.f32 %v2680, %v2680
  %v2697 = vadd.f32 %v2681, %v2682
  %v2698 = vadd.f32 %v2697, %v2683
  %v2699 = vadd.f32 %v2698, %v2684
  %v2700 = vadd.f32 %v2699, %v2685
  %v2701 = vadd.f32 %v2700, %v2686
  %v2702 = vadd.f32 %v2701, %v2687
  %v2703 = vadd.f32 %v2702, %v2688
  %v2704 = vadd.f32 %v2703, %v2689
  %v2705 = vadd.f32 %v2704, %v2690
  %v2706 = vadd.f32 %v2705, %v2691
  %v2707 = vadd.f32 %v2706, %v2692
  %v2708 = vadd.f32 %v2707, %v2693
  %v2709 = vadd.f32 %v2708, %v2694
  %v2710 = vadd.f32 %v2709, %v2695
  %v2711 = vadd.f32 %v2710, %v2696
  %v2712 = vrot.slane %v2711, 4
  %v2713 = vadd.f32 %v2711, %v2712
  %v2714 = vrot.slane %v2713, 2
  %v2715 = vadd.f32 %v2713, %v2714
  %v2716 = vrot.slane %v2715, 1
  %v2717 = vadd.f32 %v2715, %v2716
  %v2718 = vadd.f32 %v2717, 1e-12
  %v2719 = vrsqrt.pop %v2718
  %v2720 = vmul.f32 %v2665, %v2719
  %v2721 = vmul.f32 %v2666, %v2719
  %v2722 = vmul.f32 %v2667, %v2719
  %v2723 = vmul.f32 %v2668, %v2719
  %v2724 = vmul.f32 %v2669, %v2719
  %v2725 = vmul.f32 %v2670, %v2719
  %v2726 = vmul.f32 %v2671, %v2719
  %v2727 = vmul.f32 %v2672, %v2719
  %v2728 = vmul.f32 %v2673, %v2719
  %v2729 = vmul.f32 %v2674, %v2719
  %v2730 = vmul.f32 %v2675, %v2719
  %v2731 = vmul.f32 %v2676, %v2719
  %v2732 = vmul.f32 %v2677, %v2719
  %v2733 = vmul.f32 %v2678, %v2719
  %v2734 = vmul.f32 %v2679, %v2719
  %v2735 = vmul.f32 %v2680, %v2719
  %v2736 = vpack.c.bf16 %v2648, %v2648
  %v2737 = vpack.c.bf16 %v2721, %v2720
  %v2738 = vpack.c.bf16 %v2723, %v2722
  %v2739 = vpack.c.bf16 %v2725, %v2724
  %v2740 = vpack.c.bf16 %v2727, %v2726
  %v2741 = vpack.c.bf16 %v2729, %v2728
  %v2742 = vpack.c.bf16 %v2731, %v2730
  %v2743 = vpack.c.bf16 %v2733, %v2732
  %v2744 = vpack.c.bf16 %v2735, %v2734
  %2745 = vmatprep.subr.bf16.mxu0 0
  %2746 = vmatpush1.bf16.msra.mxu0 %v2737
  %2747 = vmatprep.subr.bf16.mxu0 0
  %2748 = vmatpush1.bf16.msra.mxu0 %v2738
  %2749 = vmatprep.subr.bf16.mxu0 0
  %2750 = vmatpush1.bf16.msra.mxu0 %v2739
  %2751 = vmatprep.subr.bf16.mxu0 0
  %2752 = vmatpush1.bf16.msra.mxu0 %v2740
  %2753 = vmatprep.subr.bf16.mxu0 0
  %2754 = vmatpush1.bf16.msra.mxu0 %v2741
  %2755 = vmatprep.subr.bf16.mxu0 0
  %2756 = vmatpush1.bf16.msra.mxu0 %v2742
  %2757 = vmatprep.subr.bf16.mxu0 0
  %2758 = vmatpush1.bf16.msra.mxu0 %v2743
  %2759 = vmatprep.subr.bf16.mxu0 0
  %2760 = vmatpush1.bf16.msra.mxu0 %v2744
  %2761 = vmatprep.subr.bf16.mxu0 0
  %2762 = vmatpush1.bf16.msra.mxu0 0
  %2763 = vmatprep.subr.bf16.mxu0 0
  %2764 = vmatpush1.bf16.msra.mxu0 0
  %2765 = vmatprep.subr.bf16.mxu0 0
  %2766 = vmatpush1.bf16.msra.mxu0 0
  %2767 = vmatprep.subr.bf16.mxu0 0
  %2768 = vmatpush1.bf16.msra.mxu0 0
  %2769 = vmatprep.subr.bf16.mxu0 0
  %2770 = vmatpush1.bf16.msra.mxu0 0
  %2771 = vmatprep.subr.bf16.mxu0 0
  %2772 = vmatpush1.bf16.msra.mxu0 0
  %2773 = vmatprep.subr.bf16.mxu0 0
  %2774 = vmatpush1.bf16.msra.mxu0 0
  %2775 = vmatprep.subr.bf16.mxu0 0
  %2776 = vmatpush1.bf16.msra.mxu0 0
  %2777 = vmatprep.mubr.bf16.mxu0 0
  %2778 = vmatmul.mubr.bf16.gmra.mrb[0].mxu0 %v2736
  %v2779 = vpop.f32.mrb[0].mxu0
  %v2780 = vadd.f32 0.0, %v2779
  %v2781 = vpop.f32.mrb[0].mxu0
  %v2782 = vpop.f32.mrb[0].mxu0
  %v2783 = vpop.f32.mrb[0].mxu0
  %2784 = vdwg.mxu0
  %2785 = vst [vmem:[%s3] sm:$0xff] %v2780
  // Predicated region
  $region14: #{training_model_forward.1} parent=0 // pred_check
    _
  $region15: #{training_model_forward.1} parent=0 // pred_check_branch
    %2787 = sbr.rel (0) target = $region17
  $region16: #{training_model_forward.1} parent=0 // pred_region
    _
  $region17: #{training_model_forward.1} parent=0 // pred_fallthru
    _
  // Predicated region
  $region18: #{training_model_forward.1} parent=0 // pred_check
    _
  $region19: #{training_model_forward.1} parent=0 // pred_check_branch
    %2789 = sbr.rel (0) target = $region21
  $region20: #{training_model_forward.1} parent=0 // pred_region
    _
  $region21: #{training_model_forward.1} parent=0 // pred_fallthru
    _

</llo_original>
